<compile_context>
chip_gen: v5e
topology: v5e:2x2
jax: 0.10.0
libtpu: 0.0.40
codegen_flags: <defaults>
</compile_context>

<pallas_src>
import functools

import jax
import jax.numpy as jnp
from jax.experimental import pallas as pl
from jax.experimental.pallas import tpu as pltpu


# ----------------------------- Pallas kernels ---------------------------------
def _linear_relu_t_kernel(w_ref, z_ref, b_ref, o_ref):
    # out(th, B) = W(th, z) @ z^T(z, B) + b(th, 1), ReLU; f32 accumulation.
    acc = jnp.dot(w_ref[...], z_ref[...], preferred_element_type=jnp.float32)
    acc = jnp.maximum(acc + b_ref[...], 0.0)
    o_ref[...] = acc.astype(o_ref.dtype)


def _matmul_act_kernel(w_ref, x_ref, o_ref, *, act):
    # out(Cout, tn) = W(Cout, K) @ patches(K, tn); lane-dense over the spatial axis.
    acc = jnp.dot(w_ref[...], x_ref[...], preferred_element_type=jnp.float32)
    if act == "relu":
        acc = jnp.maximum(acc, 0.0)
    else:  # "sigmoid" — exact form keeps the output provably inside [0, 1]
        acc = 1.0 / (1.0 + jnp.exp(-acc))
    o_ref[...] = acc.astype(o_ref.dtype)


# ------------------------------- wrappers --------------------------------------
def _round_up(x, m):
    return (x + m - 1) // m * m


def linear_relu_t(z, w_bf16, b_col_f32, *, th=512):
    """relu(W z^T + b) -> (Hf, B). Row order = torch's flat (c, h, w) features,
    so the result reshapes straight into the channels-first (C, 4, 4, B) layout."""
    B, zdim = z.shape
    Hf = w_bf16.shape[0]
    if Hf % th != 0:
        th = Hf
    z_t = z.T.astype(jnp.bfloat16)
    return pl.pallas_call(
        _linear_relu_t_kernel,
        out_shape=jax.ShapeDtypeStruct((Hf, B), jnp.bfloat16),
        grid_spec=pltpu.PrefetchScalarGridSpec(
            num_scalar_prefetch=0,
            grid=(Hf // th,),
            in_specs=[
                pl.BlockSpec((th, zdim), lambda i: (i, 0)),
                pl.BlockSpec((zdim, B), lambda i: (0, 0)),
                pl.BlockSpec((th, 1), lambda i: (i, 0)),
            ],
            out_specs=pl.BlockSpec((th, B), lambda i: (i, 0)),
        ),
        compiler_params=pltpu.CompilerParams(dimension_semantics=("parallel",)),
    )(w_bf16, z_t, b_col_f32)


def _im2col_chwb(x, KH, KW, stride, padding):
    """ConvTranspose2d as: dilate-by-stride -> pad by (K-1-p) -> gather the KH*KW
    shifted views, taps folded onto the leading (contraction) axis.
    Input/output are channels-first: x is (Cin, H, W, B); returns
    cols_t (KH*KW*Cin, Ho*Wo*B) with rows ordered (kh, kw, cin).  XLA glue."""
    Cin, H, W, B = x.shape
    Ho = (H - 1) * stride - 2 * padding + KH
    Wo = (W - 1) * stride - 2 * padding + KW
    Hd, Wd = (H - 1) * stride + 1, (W - 1) * stride + 1
    xd = jnp.zeros((Cin, Hd, Wd, B), x.dtype)
    xd = xd.at[:, ::stride, ::stride, :].set(x)
    ph, pw = KH - 1 - padding, KW - 1 - padding
    xp = jnp.pad(xd, ((0, 0), (ph, ph), (pw, pw), (0, 0)))
    cols_t = jnp.concatenate(
        [xp[:, kh:kh + Ho, kw:kw + Wo, :].reshape(Cin, Ho * Wo * B)
         for kh in range(KH) for kw in range(KW)],
        axis=0,
    )
    return cols_t, Ho, Wo


def conv_transpose2d_act(x_chwb, w_t_bf16, KH, KW, stride, padding, *,
                         act, out_dtype, tn=512):
    """ConvTranspose2d(bias=False) + activation as one lane-dense MXU matmul:
    out(Cout, M) = W(Cout, K) @ patches(K, M), M = Ho*Wo*B tiled on lanes.
    x is (Cin, H, W, B); returns (Cout, Ho, Wo, B)."""
    Cout, K = w_t_bf16.shape
    B = x_chwb.shape[-1]
    cols_t, Ho, Wo = _im2col_chwb(x_chwb.astype(jnp.bfloat16), KH, KW, stride, padding)
    M = Ho * Wo * B
    tn = min(tn, _round_up(M, 128))
    Mp = _round_up(M, tn)
    if Mp != M:
        cols_t = jnp.pad(cols_t, ((0, 0), (0, Mp - M)))
    out = pl.pallas_call(
        functools.partial(_matmul_act_kernel, act=act),
        out_shape=jax.ShapeDtypeStruct((Cout, Mp), out_dtype),
        grid_spec=pltpu.PrefetchScalarGridSpec(
            num_scalar_prefetch=0,
            grid=(Mp // tn,),
            in_specs=[
                pl.BlockSpec((Cout, K), lambda i: (0, 0)),   # weights resident
                pl.BlockSpec((K, tn), lambda i: (0, i)),
            ],
            out_specs=pl.BlockSpec((Cout, tn), lambda i: (0, i)),
        ),
        compiler_params=pltpu.CompilerParams(dimension_semantics=("parallel",)),
    )(w_t_bf16, cols_t)
    return out[:, :M].reshape(Cout, Ho, Wo, B)


# ----------------------- one-time weight layout prep ---------------------------
def prepare_params(params):
    """Outside-jit layout prep (params are in native torch layouts):
      - Linear weight (Hf, z_dim) stays as-is (we compute the transposed matmul),
        bias becomes a (Hf, 1) column,
      - ConvTranspose2d weights (Cin, Cout, KH, KW) -> spatially flipped,
        reshaped to (Cout, KH*KW*Cin) bf16 rows for the lane-dense matmul."""
    def conv_t(wt):
        Cin, Cout, KH, KW = wt.shape
        w_hwio = jnp.flip(wt, (2, 3)).transpose(2, 3, 0, 1)      # (KH, KW, Cin, Cout)
        return w_hwio.reshape(KH * KW * Cin, Cout).T.astype(jnp.bfloat16)

    return {
        "w_lin": params["w_lin"].astype(jnp.bfloat16),           # (ngf*64, z_dim)
        "b_lin": params["b_lin"].reshape(-1, 1).astype(jnp.float32),
        "w1": conv_t(params["w1"]),
        "w2": conv_t(params["w2"]),
        "w3": conv_t(params["w3"]),
    }


# --------------------------------- forward -------------------------------------
def wgan_g_forward(z, p, *, ngf):
    B = z.shape[0]
    out = linear_relu_t(z, p["w_lin"], p["b_lin"])                # (ngf*64, B)
    out = out.reshape(ngf * 4, 4, 4, B)                           # channels-first (C,H,W,B)
    out = conv_transpose2d_act(out, p["w1"], 3, 3, 2, 1,
                               act="relu", out_dtype=jnp.bfloat16)    # (ngf*2, 7, 7, B)
    out = conv_transpose2d_act(out, p["w2"], 3, 3, 2, 1,
                               act="relu", out_dtype=jnp.bfloat16)    # (ngf,  13,13, B)
    out = conv_transpose2d_act(out, p["w3"], 4, 4, 2, 0,
                               act="sigmoid", out_dtype=jnp.float32)  # (1, 28, 28, B)
    return out.transpose(3, 0, 1, 2)                              # NCHW (B, 1, 28, 28)


# ------------------------- pure-JAX reference (f32) -----------------------------
def _ref_forward(z, params, ngf):
    out = jnp.maximum(z @ params["w_lin"].T + params["b_lin"], 0.0)
    out = out.reshape(z.shape[0], ngf * 4, 4, 4)

    def convt(x, wt, stride, pad):
        KH, KW = wt.shape[2], wt.shape[3]
        k = jnp.flip(wt, (2, 3)).transpose(1, 0, 2, 3)            # (Cout, Cin, KH, KW)
        return jax.lax.conv_general_dilated(
            x, k, window_strides=(1, 1),
            padding=[(KH - 1 - pad, KH - 1 - pad), (KW - 1 - pad, KW - 1 - pad)],
            lhs_dilation=(stride, stride),
            dimension_numbers=("NCHW", "OIHW", "NCHW"))

    out = jnp.maximum(convt(out, params["w1"], 2, 1), 0.0)
    out = jnp.maximum(convt(out, params["w2"], 2, 1), 0.0)
    return jax.nn.sigmoid(convt(out, params["w3"], 2, 0))


if __name__ == "__main__":
    # small-but-consistent config (same structure as the module; scaled-down widths)
    z_dim, ngf, batch = 16, 8, 2

    key = jax.random.PRNGKey(0)
    ks = jax.random.split(key, 6)
    params = {
        # nn.Linear(z_dim, ngf*64): torch layout (out_features, in_features), bias (out,)
        "w_lin": 0.05 * jax.random.normal(ks[0], (ngf * 64, z_dim), jnp.float32),
        "b_lin": 0.05 * jax.random.normal(ks[1], (ngf * 64,), jnp.float32),
        # nn.ConvTranspose2d weights, torch layout (Cin, Cout, KH, KW)
        "w1": 0.05 * jax.random.normal(ks[2], (ngf * 4, ngf * 2, 3, 3), jnp.float32),
        "w2": 0.05 * jax.random.normal(ks[3], (ngf * 2, ngf * 1, 3, 3), jnp.float32),
        "w3": 0.05 * jax.random.normal(ks[4], (ngf * 1, 1, 4, 4), jnp.float32),
    }
    z = jax.random.normal(ks[5], (batch, z_dim), jnp.float32)

    prepared = prepare_params(params)            # weight layout prep once, outside jit
    fwd = jax.jit(functools.partial(wgan_g_forward, ngf=ngf))
    out = fwd(z, prepared)
    jax.block_until_ready(out)

    assert out.shape == (batch, 1, 28, 28), out.shape
    assert out.dtype == jnp.float32
    assert bool(jnp.all(jnp.isfinite(out))) and bool(jnp.all((out >= 0) & (out <= 1)))

    ref = _ref_forward(z, params, ngf)           # f32 XLA reference (loose: bf16 MXU path)
    assert bool(jnp.max(jnp.abs(out - ref)) < 2e-2), float(jnp.max(jnp.abs(out - ref)))

    print("KERNEL_OK")
</pallas_src>

<mosaic_0001>
module attributes {stable_mosaic.version = 11 : i64} {
  func.func @_linear_relu_t_kernel(%arg0: i32, %arg1: memref<512x16xbf16, #tpu.memory_space<vmem>>, %arg2: memref<16x2xbf16, #tpu.memory_space<vmem>>, %arg3: memref<512x1xf32, #tpu.memory_space<vmem>>, %arg4: memref<512x2xbf16, #tpu.memory_space<vmem>>) attributes {dimension_semantics = [#tpu.dimension_semantics<parallel>], iteration_bounds = array<i64: 1>, scalar_prefetch = 0 : i64, scratch_operands = 0 : i64, tpu.core_type = #tpu.core_type<tc>, window_params = [{transform_indices = @transform_0, window_bounds = array<i64: 512, 16>}, {pipeline_mode = #tpu.pipeline_mode<synchronous>, transform_indices = @transform_1, window_bounds = array<i64: 16, 2>}, {transform_indices = @transform_2, window_bounds = array<i64: 512, 1>}, {transform_indices = @transform_3, window_bounds = array<i64: 512, 2>}]} {
    %c0 = arith.constant 0 : index
    %c0_0 = arith.constant 0 : index
    %0 = vector.load %arg1[%c0, %c0_0] : memref<512x16xbf16, #tpu.memory_space<vmem>>, vector<512x16xbf16>
    %c0_1 = arith.constant 0 : index
    %c0_2 = arith.constant 0 : index
    %1 = vector.load %arg2[%c0_1, %c0_2] : memref<16x2xbf16, #tpu.memory_space<vmem>>, vector<16x2xbf16>
    %cst = arith.constant dense<0.000000e+00> : vector<512x2xf32>
    %2 = tpu.matmul %0, %1, %cst {dimension_numbers = #tpu.dot_dimension_numbers<[1], [0], [0], [1], [0, 0, 1, 1], [], []>} : vector<512x16xbf16>, vector<16x2xbf16>, vector<512x2xf32> -> vector<512x2xf32>
    %c0_3 = arith.constant 0 : index
    %c0_4 = arith.constant 0 : index
    %3 = vector.load %arg3[%c0_3, %c0_4] : memref<512x1xf32, #tpu.memory_space<vmem>>, vector<512x1xf32>
    %4 = vector.broadcast %3 : vector<512x1xf32> to vector<512x2xf32>
    %5 = arith.addf %2, %4 : vector<512x2xf32>
    %cst_5 = arith.constant 0.000000e+00 : f32
    %6 = vector.broadcast %cst_5 : f32 to vector<512x2xf32>
    %7 = arith.maximumf %5, %6 : vector<512x2xf32>
    %8 = arith.truncf %7 : vector<512x2xf32> to vector<512x2xbf16>
    %c0_6 = arith.constant 0 : index
    %c0_7 = arith.constant 0 : index
    %9 = vector.load %arg4[%c0_6, %c0_7] : memref<512x2xbf16, #tpu.memory_space<vmem>>, vector<512x2xbf16>
    tpu.vector_store %arg4[%c0_6, %c0_7], %8 {strides = array<i32>} : memref<512x2xbf16, #tpu.memory_space<vmem>>, vector<512x2xbf16>,
    return
  }
  func.func @transform_0(%arg0: i32) -> (i32, i32) {
    %c0_i32 = arith.constant 0 : i32
    %c0_i32_0 = arith.constant 0 : i32
    return %arg0, %c0_i32 : i32, i32
  }
  func.func @transform_1(%arg0: i32) -> (i32, i32) {
    %c0_i32 = arith.constant 0 : i32
    %c0_i32_0 = arith.constant 0 : i32
    %c0_i32_1 = arith.constant 0 : i32
    return %c0_i32, %c0_i32_0 : i32, i32
  }
  func.func @transform_2(%arg0: i32) -> (i32, i32) {
    %c0_i32 = arith.constant 0 : i32
    %c0_i32_0 = arith.constant 0 : i32
    return %arg0, %c0_i32 : i32, i32
  }
  func.func @transform_3(%arg0: i32) -> (i32, i32) {
    %c0_i32 = arith.constant 0 : i32
    %c0_i32_0 = arith.constant 0 : i32
    return %arg0, %c0_i32 : i32, i32
  }
}

module attributes {stable_mosaic.version = 11 : i64} {
  func.func @_matmul_act_kernel(%arg0: i32, %arg1: memref<16x288xbf16, #tpu.memory_space<vmem>>, %arg2: memref<288x128xbf16, #tpu.memory_space<vmem>>, %arg3: memref<16x128xbf16, #tpu.memory_space<vmem>>) attributes {dimension_semantics = [#tpu.dimension_semantics<parallel>], iteration_bounds = array<i64: 1>, scalar_prefetch = 0 : i64, scratch_operands = 0 : i64, tpu.core_type = #tpu.core_type<tc>, window_params = [{pipeline_mode = #tpu.pipeline_mode<synchronous>, transform_indices = @transform_0, window_bounds = array<i64: 16, 288>}, {transform_indices = @transform_1, window_bounds = array<i64: 288, 128>}, {transform_indices = @transform_2, window_bounds = array<i64: 16, 128>}]} {
    %c0 = arith.constant 0 : index
    %c0_0 = arith.constant 0 : index
    %0 = vector.load %arg1[%c0, %c0_0] : memref<16x288xbf16, #tpu.memory_space<vmem>>, vector<16x288xbf16>
    %c0_1 = arith.constant 0 : index
    %c0_2 = arith.constant 0 : index
    %1 = vector.load %arg2[%c0_1, %c0_2] : memref<288x128xbf16, #tpu.memory_space<vmem>>, vector<288x128xbf16>
    %cst = arith.constant dense<0.000000e+00> : vector<16x128xf32>
    %2 = tpu.matmul %0, %1, %cst {dimension_numbers = #tpu.dot_dimension_numbers<[1], [0], [0], [1], [0, 0, 1, 1], [], []>} : vector<16x288xbf16>, vector<288x128xbf16>, vector<16x128xf32> -> vector<16x128xf32>
    %cst_3 = arith.constant 0.000000e+00 : f32
    %3 = vector.broadcast %cst_3 : f32 to vector<16x128xf32>
    %4 = arith.maximumf %2, %3 : vector<16x128xf32>
    %5 = arith.truncf %4 : vector<16x128xf32> to vector<16x128xbf16>
    %c0_4 = arith.constant 0 : index
    %c0_5 = arith.constant 0 : index
    %6 = vector.load %arg3[%c0_4, %c0_5] : memref<16x128xbf16, #tpu.memory_space<vmem>>, vector<16x128xbf16>
    tpu.vector_store %arg3[%c0_4, %c0_5], %5 {strides = array<i32>} : memref<16x128xbf16, #tpu.memory_space<vmem>>, vector<16x128xbf16>,
    return
  }
  func.func @transform_0(%arg0: i32) -> (i32, i32) {
    %c0_i32 = arith.constant 0 : i32
    %c0_i32_0 = arith.constant 0 : i32
    %c0_i32_1 = arith.constant 0 : i32
    return %c0_i32, %c0_i32_0 : i32, i32
  }
  func.func @transform_1(%arg0: i32) -> (i32, i32) {
    %c0_i32 = arith.constant 0 : i32
    %c0_i32_0 = arith.constant 0 : i32
    return %c0_i32, %arg0 : i32, i32
  }
  func.func @transform_2(%arg0: i32) -> (i32, i32) {
    %c0_i32 = arith.constant 0 : i32
    %c0_i32_0 = arith.constant 0 : i32
    return %c0_i32, %arg0 : i32, i32
  }
}

module attributes {stable_mosaic.version = 11 : i64} {
  func.func @_matmul_act_kernel(%arg0: i32, %arg1: memref<8x144xbf16, #tpu.memory_space<vmem>>, %arg2: memref<144x384xbf16, #tpu.memory_space<vmem>>, %arg3: memref<8x384xbf16, #tpu.memory_space<vmem>>) attributes {dimension_semantics = [#tpu.dimension_semantics<parallel>], iteration_bounds = array<i64: 1>, scalar_prefetch = 0 : i64, scratch_operands = 0 : i64, tpu.core_type = #tpu.core_type<tc>, window_params = [{pipeline_mode = #tpu.pipeline_mode<synchronous>, transform_indices = @transform_0, window_bounds = array<i64: 8, 144>}, {transform_indices = @transform_1, window_bounds = array<i64: 144, 384>}, {transform_indices = @transform_2, window_bounds = array<i64: 8, 384>}]} {
    %c0 = arith.constant 0 : index
    %c0_0 = arith.constant 0 : index
    %0 = vector.load %arg1[%c0, %c0_0] : memref<8x144xbf16, #tpu.memory_space<vmem>>, vector<8x144xbf16>
    %c0_1 = arith.constant 0 : index
    %c0_2 = arith.constant 0 : index
    %1 = vector.load %arg2[%c0_1, %c0_2] : memref<144x384xbf16, #tpu.memory_space<vmem>>, vector<144x384xbf16>
    %cst = arith.constant dense<0.000000e+00> : vector<8x384xf32>
    %2 = tpu.matmul %0, %1, %cst {dimension_numbers = #tpu.dot_dimension_numbers<[1], [0], [0], [1], [0, 0, 1, 1], [], []>} : vector<8x144xbf16>, vector<144x384xbf16>, vector<8x384xf32> -> vector<8x384xf32>
    %cst_3 = arith.constant 0.000000e+00 : f32
    %3 = vector.broadcast %cst_3 : f32 to vector<8x384xf32>
    %4 = arith.maximumf %2, %3 : vector<8x384xf32>
    %5 = arith.truncf %4 : vector<8x384xf32> to vector<8x384xbf16>
    %c0_4 = arith.constant 0 : index
    %c0_5 = arith.constant 0 : index
    %6 = vector.load %arg3[%c0_4, %c0_5] : memref<8x384xbf16, #tpu.memory_space<vmem>>, vector<8x384xbf16>
    tpu.vector_store %arg3[%c0_4, %c0_5], %5 {strides = array<i32>} : memref<8x384xbf16, #tpu.memory_space<vmem>>, vector<8x384xbf16>,
    return
  }
  func.func @transform_0(%arg0: i32) -> (i32, i32) {
    %c0_i32 = arith.constant 0 : i32
    %c0_i32_0 = arith.constant 0 : i32
    %c0_i32_1 = arith.constant 0 : i32
    return %c0_i32, %c0_i32_0 : i32, i32
  }
  func.func @transform_1(%arg0: i32) -> (i32, i32) {
    %c0_i32 = arith.constant 0 : i32
    %c0_i32_0 = arith.constant 0 : i32
    return %c0_i32, %arg0 : i32, i32
  }
  func.func @transform_2(%arg0: i32) -> (i32, i32) {
    %c0_i32 = arith.constant 0 : i32
    %c0_i32_0 = arith.constant 0 : i32
    return %c0_i32, %arg0 : i32, i32
  }
}

module attributes {stable_mosaic.version = 11 : i64} {
  func.func @_matmul_act_kernel(%arg0: i32, %arg1: memref<1x128xbf16, #tpu.memory_space<vmem>>, %arg2: memref<128x512xbf16, #tpu.memory_space<vmem>>, %arg3: memref<1x512xf32, #tpu.memory_space<vmem>>) attributes {dimension_semantics = [#tpu.dimension_semantics<parallel>], iteration_bounds = array<i64: 4>, scalar_prefetch = 0 : i64, scratch_operands = 0 : i64, tpu.core_type = #tpu.core_type<tc>, window_params = [{pipeline_mode = #tpu.pipeline_mode<synchronous>, transform_indices = @transform_0, window_bounds = array<i64: 1, 128>}, {transform_indices = @transform_1, window_bounds = array<i64: 128, 512>}, {transform_indices = @transform_2, window_bounds = array<i64: 1, 512>}]} {
    %c0 = arith.constant 0 : index
    %c0_0 = arith.constant 0 : index
    %0 = vector.load %arg1[%c0, %c0_0] : memref<1x128xbf16, #tpu.memory_space<vmem>>, vector<1x128xbf16>
    %c0_1 = arith.constant 0 : index
    %c0_2 = arith.constant 0 : index
    %1 = vector.load %arg2[%c0_1, %c0_2] : memref<128x512xbf16, #tpu.memory_space<vmem>>, vector<128x512xbf16>
    %cst = arith.constant dense<0.000000e+00> : vector<1x512xf32>
    %2 = tpu.matmul %0, %1, %cst {dimension_numbers = #tpu.dot_dimension_numbers<[1], [0], [0], [1], [0, 0, 1, 1], [], []>} : vector<1x128xbf16>, vector<128x512xbf16>, vector<1x512xf32> -> vector<1x512xf32>
    %cst_3 = arith.constant 0.000000e+00 : f32
    %3 = vector.broadcast %cst_3 : f32 to vector<1x512xf32>
    %4 = arith.subf %3, %2 : vector<1x512xf32>
    %5 = math.exp %4 : vector<1x512xf32>
    %cst_4 = arith.constant 1.000000e+00 : f32
    %6 = vector.broadcast %cst_4 : f32 to vector<1x512xf32>
    %7 = arith.addf %6, %5 : vector<1x512xf32>
    %cst_5 = arith.constant 1.000000e+00 : f32
    %8 = vector.broadcast %cst_5 : f32 to vector<1x512xf32>
    %9 = arith.divf %8, %7 : vector<1x512xf32>
    %c0_6 = arith.constant 0 : index
    %c0_7 = arith.constant 0 : index
    %10 = vector.load %arg3[%c0_6, %c0_7] : memref<1x512xf32, #tpu.memory_space<vmem>>, vector<1x512xf32>
    tpu.vector_store %arg3[%c0_6, %c0_7], %9 {strides = array<i32>} : memref<1x512xf32, #tpu.memory_space<vmem>>, vector<1x512xf32>,
    return
  }
  func.func @transform_0(%arg0: i32) -> (i32, i32) {
    %c0_i32 = arith.constant 0 : i32
    %c0_i32_0 = arith.constant 0 : i32
    %c0_i32_1 = arith.constant 0 : i32
    return %c0_i32, %c0_i32_0 : i32, i32
  }
  func.func @transform_1(%arg0: i32) -> (i32, i32) {
    %c0_i32 = arith.constant 0 : i32
    %c0_i32_0 = arith.constant 0 : i32
    return %c0_i32, %arg0 : i32, i32
  }
  func.func @transform_2(%arg0: i32) -> (i32, i32) {
    %c0_i32 = arith.constant 0 : i32
    %c0_i32_0 = arith.constant 0 : i32
    return %c0_i32, %arg0 : i32, i32
  }
}

</mosaic_0001>

<llo_original>
// kernel: wgan_g_forward.4
$region0: #{wgan_g_forward.4}
  #allocation0 [shape = 'u32[]', space=smem, size = 0x4, offset = 0x4, fixed_abs, tag = 'smem constant byte address 0x4 - core index']
  #allocation1 [shape = 'u32[72,128]{1,0:T(1,128)}', space=vmem, size = 0x9000, scoped, tag = 'internal scratch']
  %s0 = inlined_call_operand.vmem [shape: bf16[512,16], index: 0, kind: input, shape index: {}]
  %s1 = inlined_call_operand.vmem [shape: bf16[16,2], index: 1, kind: input, shape index: {}]
  %s2 = inlined_call_operand.vmem [shape: f32[512,1], index: 2, kind: input, shape index: {}]
  %s3 = inlined_call_operand.vmem [shape: bf16[512,2], index: 3, kind: output, shape index: {}]
  %s4 = sld [smem:[#allocation0]]
  $region22: #{wgan_g_forward.4} parent=0
    _
  %s6 = ssub.s32 1, %s4
  %s7 = scalar_select 0, %s6, %s4
  // Predicated region
  $region2: #{wgan_g_forward.4} parent=0 // pred_check
    _
  $region3: #{wgan_g_forward.4} parent=0 // pred_check_branch
    %9 = sbr.rel (0) target = $region5
  $region4: #{wgan_g_forward.4} parent=0 // pred_region
    _
  $region5: #{wgan_g_forward.4} parent=0 // pred_fallthru
    _
  // Predicated region
  $region6: #{wgan_g_forward.4} parent=0 // pred_check
    _
  $region7: #{wgan_g_forward.4} parent=0 // pred_check_branch
    %11 = sbr.rel (0) target = $region9
  $region8: #{wgan_g_forward.4} parent=0 // pred_region
    _
  $region9: #{wgan_g_forward.4} parent=0 // pred_fallthru
    _
  // Predicated region
  $region10: #{wgan_g_forward.4} parent=0 // pred_check
    _
  $region11: #{wgan_g_forward.4} parent=0 // pred_check_branch
    %13 = sbr.rel (0) target = $region13
  $region12: #{wgan_g_forward.4} parent=0 // pred_region
    _
  $region13: #{wgan_g_forward.4} parent=0 // pred_fallthru
    _
  %v15 = vld [vmem:[%s0] sm:$0xf]
  %v16 = vld [vmem:[%s0 + $0x4] sm:$0xf]
  %v17 = vld [vmem:[%s0 + $0x8] sm:$0xf]
  %v18 = vld [vmem:[%s0 + $0xc] sm:$0xf]
  %v19 = vld [vmem:[%s0 + $0x10] sm:$0xf]
  %v20 = vld [vmem:[%s0 + $0x14] sm:$0xf]
  %v21 = vld [vmem:[%s0 + $0x18] sm:$0xf]
  %v22 = vld [vmem:[%s0 + $0x1c] sm:$0xf]
  %v23 = vld [vmem:[%s0 + $0x20] sm:$0xf]
  %v24 = vld [vmem:[%s0 + $0x24] sm:$0xf]
  %v25 = vld [vmem:[%s0 + $0x28] sm:$0xf]
  %v26 = vld [vmem:[%s0 + $0x2c] sm:$0xf]
  %v27 = vld [vmem:[%s0 + $0x30] sm:$0xf]
  %v28 = vld [vmem:[%s0 + $0x34] sm:$0xf]
  %v29 = vld [vmem:[%s0 + $0x38] sm:$0xf]
  %v30 = vld [vmem:[%s0 + $0x3c] sm:$0xf]
  %v31 = vld [vmem:[%s0 + $0x40] sm:$0xf]
  %v32 = vld [vmem:[%s0 + $0x44] sm:$0xf]
  %v33 = vld [vmem:[%s0 + $0x48] sm:$0xf]
  %v34 = vld [vmem:[%s0 + $0x4c] sm:$0xf]
  %v35 = vld [vmem:[%s0 + $0x50] sm:$0xf]
  %v36 = vld [vmem:[%s0 + $0x54] sm:$0xf]
  %v37 = vld [vmem:[%s0 + $0x58] sm:$0xf]
  %v38 = vld [vmem:[%s0 + $0x5c] sm:$0xf]
  %v39 = vld [vmem:[%s0 + $0x60] sm:$0xf]
  %v40 = vld [vmem:[%s0 + $0x64] sm:$0xf]
  %v41 = vld [vmem:[%s0 + $0x68] sm:$0xf]
  %v42 = vld [vmem:[%s0 + $0x6c] sm:$0xf]
  %v43 = vld [vmem:[%s0 + $0x70] sm:$0xf]
  %v44 = vld [vmem:[%s0 + $0x74] sm:$0xf]
  %v45 = vld [vmem:[%s0 + $0x78] sm:$0xf]
  %v46 = vld [vmem:[%s0 + $0x7c] sm:$0xf]
  %v47 = vld [vmem:[%s0 + $0x80] sm:$0xf]
  %v48 = vld [vmem:[%s0 + $0x84] sm:$0xf]
  %v49 = vld [vmem:[%s0 + $0x88] sm:$0xf]
  %v50 = vld [vmem:[%s0 + $0x8c] sm:$0xf]
  %v51 = vld [vmem:[%s0 + $0x90] sm:$0xf]
  %v52 = vld [vmem:[%s0 + $0x94] sm:$0xf]
  %v53 = vld [vmem:[%s0 + $0x98] sm:$0xf]
  %v54 = vld [vmem:[%s0 + $0x9c] sm:$0xf]
  %v55 = vld [vmem:[%s0 + $0xa0] sm:$0xf]
  %v56 = vld [vmem:[%s0 + $0xa4] sm:$0xf]
  %v57 = vld [vmem:[%s0 + $0xa8] sm:$0xf]
  %v58 = vld [vmem:[%s0 + $0xac] sm:$0xf]
  %v59 = vld [vmem:[%s0 + $0xb0] sm:$0xf]
  %v60 = vld [vmem:[%s0 + $0xb4] sm:$0xf]
  %v61 = vld [vmem:[%s0 + $0xb8] sm:$0xf]
  %v62 = vld [vmem:[%s0 + $0xbc] sm:$0xf]
  %v63 = vld [vmem:[%s0 + $0xc0] sm:$0xf]
  %v64 = vld [vmem:[%s0 + $0xc4] sm:$0xf]
  %v65 = vld [vmem:[%s0 + $0xc8] sm:$0xf]
  %v66 = vld [vmem:[%s0 + $0xcc] sm:$0xf]
  %v67 = vld [vmem:[%s0 + $0xd0] sm:$0xf]
  %v68 = vld [vmem:[%s0 + $0xd4] sm:$0xf]
  %v69 = vld [vmem:[%s0 + $0xd8] sm:$0xf]
  %v70 = vld [vmem:[%s0 + $0xdc] sm:$0xf]
  %v71 = vld [vmem:[%s0 + $0xe0] sm:$0xf]
  %v72 = vld [vmem:[%s0 + $0xe4] sm:$0xf]
  %v73 = vld [vmem:[%s0 + $0xe8] sm:$0xf]
  %v74 = vld [vmem:[%s0 + $0xec] sm:$0xf]
  %v75 = vld [vmem:[%s0 + $0xf0] sm:$0xf]
  %v76 = vld [vmem:[%s0 + $0xf4] sm:$0xf]
  %v77 = vld [vmem:[%s0 + $0xf8] sm:$0xf]
  %v78 = vld [vmem:[%s0 + $0xfc] sm:$0xf]
  %v79 = vld [vmem:[%s1] sm:$0xf]
  %v80 = vld [vmem:[%s1 + $0x4] sm:$0xf]
  %v81 = vld [vmem:[%s2] sm:$0xff]
  %v82 = vld [vmem:[%s2 + $0x8] sm:$0xff]
  %v83 = vld [vmem:[%s2 + $0x10] sm:$0xff]
  %v84 = vld [vmem:[%s2 + $0x18] sm:$0xff]
  %v85 = vld [vmem:[%s2 + $0x20] sm:$0xff]
  %v86 = vld [vmem:[%s2 + $0x28] sm:$0xff]
  %v87 = vld [vmem:[%s2 + $0x30] sm:$0xff]
  %v88 = vld [vmem:[%s2 + $0x38] sm:$0xff]
  %v89 = vld [vmem:[%s2 + $0x40] sm:$0xff]
  %v90 = vld [vmem:[%s2 + $0x48] sm:$0xff]
  %v91 = vld [vmem:[%s2 + $0x50] sm:$0xff]
  %v92 = vld [vmem:[%s2 + $0x58] sm:$0xff]
  %v93 = vld [vmem:[%s2 + $0x60] sm:$0xff]
  %v94 = vld [vmem:[%s2 + $0x68] sm:$0xff]
  %v95 = vld [vmem:[%s2 + $0x70] sm:$0xff]
  %v96 = vld [vmem:[%s2 + $0x78] sm:$0xff]
  %v97 = vld [vmem:[%s2 + $0x80] sm:$0xff]
  %v98 = vld [vmem:[%s2 + $0x88] sm:$0xff]
  %v99 = vld [vmem:[%s2 + $0x90] sm:$0xff]
  %v100 = vld [vmem:[%s2 + $0x98] sm:$0xff]
  %v101 = vld [vmem:[%s2 + $0xa0] sm:$0xff]
  %v102 = vld [vmem:[%s2 + $0xa8] sm:$0xff]
  %v103 = vld [vmem:[%s2 + $0xb0] sm:$0xff]
  %v104 = vld [vmem:[%s2 + $0xb8] sm:$0xff]
  %v105 = vld [vmem:[%s2 + $0xc0] sm:$0xff]
  %v106 = vld [vmem:[%s2 + $0xc8] sm:$0xff]
  %v107 = vld [vmem:[%s2 + $0xd0] sm:$0xff]
  %v108 = vld [vmem:[%s2 + $0xd8] sm:$0xff]
  %v109 = vld [vmem:[%s2 + $0xe0] sm:$0xff]
  %v110 = vld [vmem:[%s2 + $0xe8] sm:$0xff]
  %v111 = vld [vmem:[%s2 + $0xf0] sm:$0xff]
  %v112 = vld [vmem:[%s2 + $0xf8] sm:$0xff]
  %v113 = vld [vmem:[%s2 + $0x100] sm:$0xff]
  %v114 = vld [vmem:[%s2 + $0x108] sm:$0xff]
  %v115 = vld [vmem:[%s2 + $0x110] sm:$0xff]
  %v116 = vld [vmem:[%s2 + $0x118] sm:$0xff]
  %v117 = vld [vmem:[%s2 + $0x120] sm:$0xff]
  %v118 = vld [vmem:[%s2 + $0x128] sm:$0xff]
  %v119 = vld [vmem:[%s2 + $0x130] sm:$0xff]
  %v120 = vld [vmem:[%s2 + $0x138] sm:$0xff]
  %v121 = vld [vmem:[%s2 + $0x140] sm:$0xff]
  %v122 = vld [vmem:[%s2 + $0x148] sm:$0xff]
  %v123 = vld [vmem:[%s2 + $0x150] sm:$0xff]
  %v124 = vld [vmem:[%s2 + $0x158] sm:$0xff]
  %v125 = vld [vmem:[%s2 + $0x160] sm:$0xff]
  %v126 = vld [vmem:[%s2 + $0x168] sm:$0xff]
  %v127 = vld [vmem:[%s2 + $0x170] sm:$0xff]
  %v128 = vld [vmem:[%s2 + $0x178] sm:$0xff]
  %v129 = vld [vmem:[%s2 + $0x180] sm:$0xff]
  %v130 = vld [vmem:[%s2 + $0x188] sm:$0xff]
  %v131 = vld [vmem:[%s2 + $0x190] sm:$0xff]
  %v132 = vld [vmem:[%s2 + $0x198] sm:$0xff]
  %v133 = vld [vmem:[%s2 + $0x1a0] sm:$0xff]
  %v134 = vld [vmem:[%s2 + $0x1a8] sm:$0xff]
  %v135 = vld [vmem:[%s2 + $0x1b0] sm:$0xff]
  %v136 = vld [vmem:[%s2 + $0x1b8] sm:$0xff]
  %v137 = vld [vmem:[%s2 + $0x1c0] sm:$0xff]
  %v138 = vld [vmem:[%s2 + $0x1c8] sm:$0xff]
  %v139 = vld [vmem:[%s2 + $0x1d0] sm:$0xff]
  %v140 = vld [vmem:[%s2 + $0x1d8] sm:$0xff]
  %v141 = vld [vmem:[%s2 + $0x1e0] sm:$0xff]
  %v142 = vld [vmem:[%s2 + $0x1e8] sm:$0xff]
  %v143 = vld [vmem:[%s2 + $0x1f0] sm:$0xff]
  %v144 = vld [vmem:[%s2 + $0x1f8] sm:$0xff]
  %146 = vset.pattern.permute.xlu0 0
  %147 = vperm.xlu0 %146, %v81
  %v148 = vpop.permute.xlu0 %147
  %151 = vset.pattern.permute.xlu0 0
  %152 = vperm.xlu0 %151, %v82
  %v153 = vpop.permute.xlu0 %152
  %156 = vset.pattern.permute.xlu0 0
  %157 = vperm.xlu0 %156, %v83
  %v158 = vpop.permute.xlu0 %157
  %161 = vset.pattern.permute.xlu0 0
  %162 = vperm.xlu0 %161, %v84
  %v163 = vpop.permute.xlu0 %162
  %166 = vset.pattern.permute.xlu0 0
  %167 = vperm.xlu0 %166, %v85
  %v168 = vpop.permute.xlu0 %167
  %171 = vset.pattern.permute.xlu0 0
  %172 = vperm.xlu0 %171, %v86
  %v173 = vpop.permute.xlu0 %172
  %176 = vset.pattern.permute.xlu0 0
  %177 = vperm.xlu0 %176, %v87
  %v178 = vpop.permute.xlu0 %177
  %181 = vset.pattern.permute.xlu0 0
  %182 = vperm.xlu0 %181, %v88
  %v183 = vpop.permute.xlu0 %182
  %186 = vset.pattern.permute.xlu0 0
  %187 = vperm.xlu0 %186, %v89
  %v188 = vpop.permute.xlu0 %187
  %191 = vset.pattern.permute.xlu0 0
  %192 = vperm.xlu0 %191, %v90
  %v193 = vpop.permute.xlu0 %192
  %196 = vset.pattern.permute.xlu0 0
  %197 = vperm.xlu0 %196, %v91
  %v198 = vpop.permute.xlu0 %197
  %201 = vset.pattern.permute.xlu0 0
  %202 = vperm.xlu0 %201, %v92
  %v203 = vpop.permute.xlu0 %202
  %206 = vset.pattern.permute.xlu0 0
  %207 = vperm.xlu0 %206, %v93
  %v208 = vpop.permute.xlu0 %207
  %211 = vset.pattern.permute.xlu0 0
  %212 = vperm.xlu0 %211, %v94
  %v213 = vpop.permute.xlu0 %212
  %216 = vset.pattern.permute.xlu0 0
  %217 = vperm.xlu0 %216, %v95
  %v218 = vpop.permute.xlu0 %217
  %221 = vset.pattern.permute.xlu0 0
  %222 = vperm.xlu0 %221, %v96
  %v223 = vpop.permute.xlu0 %222
  %226 = vset.pattern.permute.xlu0 0
  %227 = vperm.xlu0 %226, %v97
  %v228 = vpop.permute.xlu0 %227
  %231 = vset.pattern.permute.xlu0 0
  %232 = vperm.xlu0 %231, %v98
  %v233 = vpop.permute.xlu0 %232
  %236 = vset.pattern.permute.xlu0 0
  %237 = vperm.xlu0 %236, %v99
  %v238 = vpop.permute.xlu0 %237
  %241 = vset.pattern.permute.xlu0 0
  %242 = vperm.xlu0 %241, %v100
  %v243 = vpop.permute.xlu0 %242
  %246 = vset.pattern.permute.xlu0 0
  %247 = vperm.xlu0 %246, %v101
  %v248 = vpop.permute.xlu0 %247
  %251 = vset.pattern.permute.xlu0 0
  %252 = vperm.xlu0 %251, %v102
  %v253 = vpop.permute.xlu0 %252
  %256 = vset.pattern.permute.xlu0 0
  %257 = vperm.xlu0 %256, %v103
  %v258 = vpop.permute.xlu0 %257
  %261 = vset.pattern.permute.xlu0 0
  %262 = vperm.xlu0 %261, %v104
  %v263 = vpop.permute.xlu0 %262
  %266 = vset.pattern.permute.xlu0 0
  %267 = vperm.xlu0 %266, %v105
  %v268 = vpop.permute.xlu0 %267
  %271 = vset.pattern.permute.xlu0 0
  %272 = vperm.xlu0 %271, %v106
  %v273 = vpop.permute.xlu0 %272
  %276 = vset.pattern.permute.xlu0 0
  %277 = vperm.xlu0 %276, %v107
  %v278 = vpop.permute.xlu0 %277
  %281 = vset.pattern.permute.xlu0 0
  %282 = vperm.xlu0 %281, %v108
  %v283 = vpop.permute.xlu0 %282
  %286 = vset.pattern.permute.xlu0 0
  %287 = vperm.xlu0 %286, %v109
  %v288 = vpop.permute.xlu0 %287
  %291 = vset.pattern.permute.xlu0 0
  %292 = vperm.xlu0 %291, %v110
  %v293 = vpop.permute.xlu0 %292
  %296 = vset.pattern.permute.xlu0 0
  %297 = vperm.xlu0 %296, %v111
  %v298 = vpop.permute.xlu0 %297
  %301 = vset.pattern.permute.xlu0 0
  %302 = vperm.xlu0 %301, %v112
  %v303 = vpop.permute.xlu0 %302
  %306 = vset.pattern.permute.xlu0 0
  %307 = vperm.xlu0 %306, %v113
  %v308 = vpop.permute.xlu0 %307
  %311 = vset.pattern.permute.xlu0 0
  %312 = vperm.xlu0 %311, %v114
  %v313 = vpop.permute.xlu0 %312
  %316 = vset.pattern.permute.xlu0 0
  %317 = vperm.xlu0 %316, %v115
  %v318 = vpop.permute.xlu0 %317
  %321 = vset.pattern.permute.xlu0 0
  %322 = vperm.xlu0 %321, %v116
  %v323 = vpop.permute.xlu0 %322
  %326 = vset.pattern.permute.xlu0 0
  %327 = vperm.xlu0 %326, %v117
  %v328 = vpop.permute.xlu0 %327
  %331 = vset.pattern.permute.xlu0 0
  %332 = vperm.xlu0 %331, %v118
  %v333 = vpop.permute.xlu0 %332
  %336 = vset.pattern.permute.xlu0 0
  %337 = vperm.xlu0 %336, %v119
  %v338 = vpop.permute.xlu0 %337
  %341 = vset.pattern.permute.xlu0 0
  %342 = vperm.xlu0 %341, %v120
  %v343 = vpop.permute.xlu0 %342
  %346 = vset.pattern.permute.xlu0 0
  %347 = vperm.xlu0 %346, %v121
  %v348 = vpop.permute.xlu0 %347
  %351 = vset.pattern.permute.xlu0 0
  %352 = vperm.xlu0 %351, %v122
  %v353 = vpop.permute.xlu0 %352
  %356 = vset.pattern.permute.xlu0 0
  %357 = vperm.xlu0 %356, %v123
  %v358 = vpop.permute.xlu0 %357
  %361 = vset.pattern.permute.xlu0 0
  %362 = vperm.xlu0 %361, %v124
  %v363 = vpop.permute.xlu0 %362
  %366 = vset.pattern.permute.xlu0 0
  %367 = vperm.xlu0 %366, %v125
  %v368 = vpop.permute.xlu0 %367
  %371 = vset.pattern.permute.xlu0 0
  %372 = vperm.xlu0 %371, %v126
  %v373 = vpop.permute.xlu0 %372
  %376 = vset.pattern.permute.xlu0 0
  %377 = vperm.xlu0 %376, %v127
  %v378 = vpop.permute.xlu0 %377
  %381 = vset.pattern.permute.xlu0 0
  %382 = vperm.xlu0 %381, %v128
  %v383 = vpop.permute.xlu0 %382
  %386 = vset.pattern.permute.xlu0 0
  %387 = vperm.xlu0 %386, %v129
  %v388 = vpop.permute.xlu0 %387
  %391 = vset.pattern.permute.xlu0 0
  %392 = vperm.xlu0 %391, %v130
  %v393 = vpop.permute.xlu0 %392
  %396 = vset.pattern.permute.xlu0 0
  %397 = vperm.xlu0 %396, %v131
  %v398 = vpop.permute.xlu0 %397
  %401 = vset.pattern.permute.xlu0 0
  %402 = vperm.xlu0 %401, %v132
  %v403 = vpop.permute.xlu0 %402
  %406 = vset.pattern.permute.xlu0 0
  %407 = vperm.xlu0 %406, %v133
  %v408 = vpop.permute.xlu0 %407
  %411 = vset.pattern.permute.xlu0 0
  %412 = vperm.xlu0 %411, %v134
  %v413 = vpop.permute.xlu0 %412
  %416 = vset.pattern.permute.xlu0 0
  %417 = vperm.xlu0 %416, %v135
  %v418 = vpop.permute.xlu0 %417
  %421 = vset.pattern.permute.xlu0 0
  %422 = vperm.xlu0 %421, %v136
  %v423 = vpop.permute.xlu0 %422
  %426 = vset.pattern.permute.xlu0 0
  %427 = vperm.xlu0 %426, %v137
  %v428 = vpop.permute.xlu0 %427
  %431 = vset.pattern.permute.xlu0 0
  %432 = vperm.xlu0 %431, %v138
  %v433 = vpop.permute.xlu0 %432
  %436 = vset.pattern.permute.xlu0 0
  %437 = vperm.xlu0 %436, %v139
  %v438 = vpop.permute.xlu0 %437
  %441 = vset.pattern.permute.xlu0 0
  %442 = vperm.xlu0 %441, %v140
  %v443 = vpop.permute.xlu0 %442
  %446 = vset.pattern.permute.xlu0 0
  %447 = vperm.xlu0 %446, %v141
  %v448 = vpop.permute.xlu0 %447
  %451 = vset.pattern.permute.xlu0 0
  %452 = vperm.xlu0 %451, %v142
  %v453 = vpop.permute.xlu0 %452
  %456 = vset.pattern.permute.xlu0 0
  %457 = vperm.xlu0 %456, %v143
  %v458 = vpop.permute.xlu0 %457
  %461 = vset.pattern.permute.xlu0 0
  %462 = vperm.xlu0 %461, %v144
  %v463 = vpop.permute.xlu0 %462
  %v529 = vunpack.c.l.b16 %v15
  %v530 = vunpack.c.l.b16 %v16
  %v531 = vunpack.c.l.b16 %v17
  %v532 = vunpack.c.l.b16 %v18
  %v533 = vunpack.c.l.b16 %v19
  %v534 = vunpack.c.l.b16 %v20
  %v535 = vunpack.c.l.b16 %v21
  %v536 = vunpack.c.l.b16 %v22
  %v537 = vunpack.c.l.b16 %v23
  %v538 = vunpack.c.l.b16 %v24
  %v539 = vunpack.c.l.b16 %v25
  %v540 = vunpack.c.l.b16 %v26
  %v541 = vunpack.c.l.b16 %v27
  %v542 = vunpack.c.l.b16 %v28
  %v543 = vunpack.c.l.b16 %v29
  %v544 = vunpack.c.l.b16 %v30
  %v545 = vunpack.c.l.b16 %v31
  %v546 = vunpack.c.l.b16 %v32
  %v547 = vunpack.c.l.b16 %v33
  %v548 = vunpack.c.l.b16 %v34
  %v549 = vunpack.c.l.b16 %v35
  %v550 = vunpack.c.l.b16 %v36
  %v551 = vunpack.c.l.b16 %v37
  %v552 = vunpack.c.l.b16 %v38
  %v553 = vunpack.c.l.b16 %v39
  %v554 = vunpack.c.l.b16 %v40
  %v555 = vunpack.c.l.b16 %v41
  %v556 = vunpack.c.l.b16 %v42
  %v557 = vunpack.c.l.b16 %v43
  %v558 = vunpack.c.l.b16 %v44
  %v559 = vunpack.c.l.b16 %v45
  %v560 = vunpack.c.l.b16 %v46
  %v561 = vunpack.c.l.b16 %v47
  %v562 = vunpack.c.l.b16 %v48
  %v563 = vunpack.c.l.b16 %v49
  %v564 = vunpack.c.l.b16 %v50
  %v565 = vunpack.c.l.b16 %v51
  %v566 = vunpack.c.l.b16 %v52
  %v567 = vunpack.c.l.b16 %v53
  %v568 = vunpack.c.l.b16 %v54
  %v569 = vunpack.c.l.b16 %v55
  %v570 = vunpack.c.l.b16 %v56
  %v571 = vunpack.c.l.b16 %v57
  %v572 = vunpack.c.l.b16 %v58
  %v573 = vunpack.c.l.b16 %v59
  %v574 = vunpack.c.l.b16 %v60
  %v575 = vunpack.c.l.b16 %v61
  %v576 = vunpack.c.l.b16 %v62
  %v577 = vunpack.c.l.b16 %v63
  %v578 = vunpack.c.l.b16 %v64
  %v579 = vunpack.c.l.b16 %v65
  %v580 = vunpack.c.l.b16 %v66
  %v581 = vunpack.c.l.b16 %v67
  %v582 = vunpack.c.l.b16 %v68
  %v583 = vunpack.c.l.b16 %v69
  %v584 = vunpack.c.l.b16 %v70
  %v585 = vunpack.c.l.b16 %v71
  %v586 = vunpack.c.l.b16 %v72
  %v587 = vunpack.c.l.b16 %v73
  %v588 = vunpack.c.l.b16 %v74
  %v589 = vunpack.c.l.b16 %v75
  %v590 = vunpack.c.l.b16 %v76
  %v591 = vunpack.c.l.b16 %v77
  %v592 = vunpack.c.l.b16 %v78
  %v593 = vpack.c.b16 %v530, %v529
  %v594 = vpack.c.b16 %v532, %v531
  %v595 = vpack.c.b16 %v534, %v533
  %v596 = vpack.c.b16 %v536, %v535
  %v597 = vpack.c.b16 %v538, %v537
  %v598 = vpack.c.b16 %v540, %v539
  %v599 = vpack.c.b16 %v542, %v541
  %v600 = vpack.c.b16 %v544, %v543
  %v601 = vpack.c.b16 %v546, %v545
  %v602 = vpack.c.b16 %v548, %v547
  %v603 = vpack.c.b16 %v550, %v549
  %v604 = vpack.c.b16 %v552, %v551
  %v605 = vpack.c.b16 %v554, %v553
  %v606 = vpack.c.b16 %v556, %v555
  %v607 = vpack.c.b16 %v558, %v557
  %v608 = vpack.c.b16 %v560, %v559
  %v609 = vpack.c.b16 %v562, %v561
  %v610 = vpack.c.b16 %v564, %v563
  %v611 = vpack.c.b16 %v566, %v565
  %v612 = vpack.c.b16 %v568, %v567
  %v613 = vpack.c.b16 %v570, %v569
  %v614 = vpack.c.b16 %v572, %v571
  %v615 = vpack.c.b16 %v574, %v573
  %v616 = vpack.c.b16 %v576, %v575
  %v617 = vpack.c.b16 %v578, %v577
  %v618 = vpack.c.b16 %v580, %v579
  %v619 = vpack.c.b16 %v582, %v581
  %v620 = vpack.c.b16 %v584, %v583
  %v621 = vpack.c.b16 %v586, %v585
  %v622 = vpack.c.b16 %v588, %v587
  %v623 = vpack.c.b16 %v590, %v589
  %v624 = vpack.c.b16 %v592, %v591
  %v627 = vunpack.c.l.b16 %v79
  %v628 = vunpack.c.l.b16 %v80
  %v629 = vpack.c.b16 %v628, %v627
  %vm631 = vcmask 130048
  %v633 = vsel %vm631, %v593, 0
  %v636 = vsel %vm631, %v594, 0
  %v639 = vsel %vm631, %v595, 0
  %v642 = vsel %vm631, %v596, 0
  %v645 = vsel %vm631, %v597, 0
  %v648 = vsel %vm631, %v598, 0
  %v651 = vsel %vm631, %v599, 0
  %v654 = vsel %vm631, %v600, 0
  %v657 = vsel %vm631, %v601, 0
  %v660 = vsel %vm631, %v602, 0
  %v663 = vsel %vm631, %v603, 0
  %v666 = vsel %vm631, %v604, 0
  %v669 = vsel %vm631, %v605, 0
  %v672 = vsel %vm631, %v606, 0
  %v675 = vsel %vm631, %v607, 0
  %v678 = vsel %vm631, %v608, 0
  %v681 = vsel %vm631, %v609, 0
  %v684 = vsel %vm631, %v610, 0
  %v687 = vsel %vm631, %v611, 0
  %v690 = vsel %vm631, %v612, 0
  %v693 = vsel %vm631, %v613, 0
  %v696 = vsel %vm631, %v614, 0
  %v699 = vsel %vm631, %v615, 0
  %v702 = vsel %vm631, %v616, 0
  %v705 = vsel %vm631, %v617, 0
  %v708 = vsel %vm631, %v618, 0
  %v711 = vsel %vm631, %v619, 0
  %v714 = vsel %vm631, %v620, 0
  %v717 = vsel %vm631, %v621, 0
  %v720 = vsel %vm631, %v622, 0
  %v723 = vsel %vm631, %v623, 0
  %v726 = vsel %vm631, %v624, 0
  %728 = vmatpush.bf16.msra.mxu0 0
  %729 = vmatpush.bf16.msra.mxu0 0
  %730 = vmatpush.bf16.msra.mxu0 0
  %731 = vmatpush.bf16.msra.mxu0 0
  %732 = vmatpush.bf16.msra.mxu0 0
  %733 = vmatpush.bf16.msra.mxu0 0
  %734 = vmatpush.bf16.msra.mxu0 0
  %735 = vmatpush.bf16.msra.mxu0 %v629
  %736 = vmatmul.bf16.gmra.mxu0 %v633
  %v737 = vpop.f32.mrf.mxu0
  %v738 = vadd.f32 %v148, %v737
  %v739 = vpop.f32.mrf.mxu0
  %v740 = vadd.f32 %v153, %v739
  %741 = vmatmul.bf16.gmra.mxu0 %v636
  %v742 = vpop.f32.mrf.mxu0
  %v743 = vadd.f32 %v158, %v742
  %v744 = vpop.f32.mrf.mxu0
  %v745 = vadd.f32 %v163, %v744
  %746 = vmatmul.bf16.gmra.mxu0 %v639
  %v747 = vpop.f32.mrf.mxu0
  %v748 = vadd.f32 %v168, %v747
  %v749 = vpop.f32.mrf.mxu0
  %v750 = vadd.f32 %v173, %v749
  %751 = vmatmul.bf16.gmra.mxu0 %v642
  %v752 = vpop.f32.mrf.mxu0
  %v753 = vadd.f32 %v178, %v752
  %v754 = vpop.f32.mrf.mxu0
  %v755 = vadd.f32 %v183, %v754
  %756 = vmatmul.bf16.gmra.mxu0 %v645
  %v757 = vpop.f32.mrf.mxu0
  %v758 = vadd.f32 %v188, %v757
  %v759 = vpop.f32.mrf.mxu0
  %v760 = vadd.f32 %v193, %v759
  %761 = vmatmul.bf16.gmra.mxu0 %v648
  %v762 = vpop.f32.mrf.mxu0
  %v763 = vadd.f32 %v198, %v762
  %v764 = vpop.f32.mrf.mxu0
  %v765 = vadd.f32 %v203, %v764
  %766 = vmatmul.bf16.gmra.mxu0 %v651
  %v767 = vpop.f32.mrf.mxu0
  %v768 = vadd.f32 %v208, %v767
  %v769 = vpop.f32.mrf.mxu0
  %v770 = vadd.f32 %v213, %v769
  %771 = vmatmul.bf16.gmra.mxu0 %v654
  %v772 = vpop.f32.mrf.mxu0
  %v773 = vadd.f32 %v218, %v772
  %v774 = vpop.f32.mrf.mxu0
  %v775 = vadd.f32 %v223, %v774
  %776 = vmatmul.bf16.gmra.mxu0 %v657
  %v777 = vpop.f32.mrf.mxu0
  %v778 = vadd.f32 %v228, %v777
  %v779 = vpop.f32.mrf.mxu0
  %v780 = vadd.f32 %v233, %v779
  %781 = vmatmul.bf16.gmra.mxu0 %v660
  %v782 = vpop.f32.mrf.mxu0
  %v783 = vadd.f32 %v238, %v782
  %v784 = vpop.f32.mrf.mxu0
  %v785 = vadd.f32 %v243, %v784
  %786 = vmatmul.bf16.gmra.mxu0 %v663
  %v787 = vpop.f32.mrf.mxu0
  %v788 = vadd.f32 %v248, %v787
  %v789 = vpop.f32.mrf.mxu0
  %v790 = vadd.f32 %v253, %v789
  %791 = vmatmul.bf16.gmra.mxu0 %v666
  %v792 = vpop.f32.mrf.mxu0
  %v793 = vadd.f32 %v258, %v792
  %v794 = vpop.f32.mrf.mxu0
  %v795 = vadd.f32 %v263, %v794
  %796 = vmatmul.bf16.gmra.mxu0 %v669
  %v797 = vpop.f32.mrf.mxu0
  %v798 = vadd.f32 %v268, %v797
  %v799 = vpop.f32.mrf.mxu0
  %v800 = vadd.f32 %v273, %v799
  %801 = vmatmul.bf16.gmra.mxu0 %v672
  %v802 = vpop.f32.mrf.mxu0
  %v803 = vadd.f32 %v278, %v802
  %v804 = vpop.f32.mrf.mxu0
  %v805 = vadd.f32 %v283, %v804
  %806 = vmatmul.bf16.gmra.mxu0 %v675
  %v807 = vpop.f32.mrf.mxu0
  %v808 = vadd.f32 %v288, %v807
  %v809 = vpop.f32.mrf.mxu0
  %v810 = vadd.f32 %v293, %v809
  %811 = vmatmul.bf16.gmra.mxu0 %v678
  %v812 = vpop.f32.mrf.mxu0
  %v813 = vadd.f32 %v298, %v812
  %v814 = vpop.f32.mrf.mxu0
  %v815 = vadd.f32 %v303, %v814
  %816 = vmatmul.bf16.gmra.mxu0 %v681
  %v817 = vpop.f32.mrf.mxu0
  %v818 = vadd.f32 %v308, %v817
  %v819 = vpop.f32.mrf.mxu0
  %v820 = vadd.f32 %v313, %v819
  %821 = vmatmul.bf16.gmra.mxu0 %v684
  %v822 = vpop.f32.mrf.mxu0
  %v823 = vadd.f32 %v318, %v822
  %v824 = vpop.f32.mrf.mxu0
  %v825 = vadd.f32 %v323, %v824
  %826 = vmatmul.bf16.gmra.mxu0 %v687
  %v827 = vpop.f32.mrf.mxu0
  %v828 = vadd.f32 %v328, %v827
  %v829 = vpop.f32.mrf.mxu0
  %v830 = vadd.f32 %v333, %v829
  %831 = vmatmul.bf16.gmra.mxu0 %v690
  %v832 = vpop.f32.mrf.mxu0
  %v833 = vadd.f32 %v338, %v832
  %v834 = vpop.f32.mrf.mxu0
  %v835 = vadd.f32 %v343, %v834
  %836 = vmatmul.bf16.gmra.mxu0 %v693
  %v837 = vpop.f32.mrf.mxu0
  %v838 = vadd.f32 %v348, %v837
  %v839 = vpop.f32.mrf.mxu0
  %v840 = vadd.f32 %v353, %v839
  %841 = vmatmul.bf16.gmra.mxu0 %v696
  %v842 = vpop.f32.mrf.mxu0
  %v843 = vadd.f32 %v358, %v842
  %v844 = vpop.f32.mrf.mxu0
  %v845 = vadd.f32 %v363, %v844
  %846 = vmatmul.bf16.gmra.mxu0 %v699
  %v847 = vpop.f32.mrf.mxu0
  %v848 = vadd.f32 %v368, %v847
  %v849 = vpop.f32.mrf.mxu0
  %v850 = vadd.f32 %v373, %v849
  %851 = vmatmul.bf16.gmra.mxu0 %v702
  %v852 = vpop.f32.mrf.mxu0
  %v853 = vadd.f32 %v378, %v852
  %v854 = vpop.f32.mrf.mxu0
  %v855 = vadd.f32 %v383, %v854
  %856 = vmatmul.bf16.gmra.mxu0 %v705
  %v857 = vpop.f32.mrf.mxu0
  %v858 = vadd.f32 %v388, %v857
  %v859 = vpop.f32.mrf.mxu0
  %v860 = vadd.f32 %v393, %v859
  %861 = vmatmul.bf16.gmra.mxu0 %v708
  %v862 = vpop.f32.mrf.mxu0
  %v863 = vadd.f32 %v398, %v862
  %v864 = vpop.f32.mrf.mxu0
  %v865 = vadd.f32 %v403, %v864
  %866 = vmatmul.bf16.gmra.mxu0 %v711
  %v867 = vpop.f32.mrf.mxu0
  %v868 = vadd.f32 %v408, %v867
  %v869 = vpop.f32.mrf.mxu0
  %v870 = vadd.f32 %v413, %v869
  %871 = vmatmul.bf16.gmra.mxu0 %v714
  %v872 = vpop.f32.mrf.mxu0
  %v873 = vadd.f32 %v418, %v872
  %v874 = vpop.f32.mrf.mxu0
  %v875 = vadd.f32 %v423, %v874
  %876 = vmatmul.bf16.gmra.mxu0 %v717
  %v877 = vpop.f32.mrf.mxu0
  %v878 = vadd.f32 %v428, %v877
  %v879 = vpop.f32.mrf.mxu0
  %v880 = vadd.f32 %v433, %v879
  %881 = vmatmul.bf16.gmra.mxu0 %v720
  %v882 = vpop.f32.mrf.mxu0
  %v883 = vadd.f32 %v438, %v882
  %v884 = vpop.f32.mrf.mxu0
  %v885 = vadd.f32 %v443, %v884
  %886 = vmatmul.bf16.gmra.mxu0 %v723
  %v887 = vpop.f32.mrf.mxu0
  %v888 = vadd.f32 %v448, %v887
  %v889 = vpop.f32.mrf.mxu0
  %v890 = vadd.f32 %v453, %v889
  %891 = vmatmul.bf16.gmra.mxu0 %v726
  %v892 = vpop.f32.mrf.mxu0
  %v893 = vadd.f32 %v458, %v892
  %v894 = vpop.f32.mrf.mxu0
  %v895 = vadd.f32 %v463, %v894
  %896 = vdwg.mxu0
  %v897 = vmax.f32 %v738, 0.0
  %v898 = vmax.f32 %v740, 0.0
  %v899 = vmax.f32 %v743, 0.0
  %v900 = vmax.f32 %v745, 0.0
  %v901 = vmax.f32 %v748, 0.0
  %v902 = vmax.f32 %v750, 0.0
  %v903 = vmax.f32 %v753, 0.0
  %v904 = vmax.f32 %v755, 0.0
  %v905 = vmax.f32 %v758, 0.0
  %v906 = vmax.f32 %v760, 0.0
  %v907 = vmax.f32 %v763, 0.0
  %v908 = vmax.f32 %v765, 0.0
  %v909 = vmax.f32 %v768, 0.0
  %v910 = vmax.f32 %v770, 0.0
  %v911 = vmax.f32 %v773, 0.0
  %v912 = vmax.f32 %v775, 0.0
  %v913 = vmax.f32 %v778, 0.0
  %v914 = vmax.f32 %v780, 0.0
  %v915 = vmax.f32 %v783, 0.0
  %v916 = vmax.f32 %v785, 0.0
  %v917 = vmax.f32 %v788, 0.0
  %v918 = vmax.f32 %v790, 0.0
  %v919 = vmax.f32 %v793, 0.0
  %v920 = vmax.f32 %v795, 0.0
  %v921 = vmax.f32 %v798, 0.0
  %v922 = vmax.f32 %v800, 0.0
  %v923 = vmax.f32 %v803, 0.0
  %v924 = vmax.f32 %v805, 0.0
  %v925 = vmax.f32 %v808, 0.0
  %v926 = vmax.f32 %v810, 0.0
  %v927 = vmax.f32 %v813, 0.0
  %v928 = vmax.f32 %v815, 0.0
  %v929 = vmax.f32 %v818, 0.0
  %v930 = vmax.f32 %v820, 0.0
  %v931 = vmax.f32 %v823, 0.0
  %v932 = vmax.f32 %v825, 0.0
  %v933 = vmax.f32 %v828, 0.0
  %v934 = vmax.f32 %v830, 0.0
  %v935 = vmax.f32 %v833, 0.0
  %v936 = vmax.f32 %v835, 0.0
  %v937 = vmax.f32 %v838, 0.0
  %v938 = vmax.f32 %v840, 0.0
  %v939 = vmax.f32 %v843, 0.0
  %v940 = vmax.f32 %v845, 0.0
  %v941 = vmax.f32 %v848, 0.0
  %v942 = vmax.f32 %v850, 0.0
  %v943 = vmax.f32 %v853, 0.0
  %v944 = vmax.f32 %v855, 0.0
  %v945 = vmax.f32 %v858, 0.0
  %v946 = vmax.f32 %v860, 0.0
  %v947 = vmax.f32 %v863, 0.0
  %v948 = vmax.f32 %v865, 0.0
  %v949 = vmax.f32 %v868, 0.0
  %v950 = vmax.f32 %v870, 0.0
  %v951 = vmax.f32 %v873, 0.0
  %v952 = vmax.f32 %v875, 0.0
  %v953 = vmax.f32 %v878, 0.0
  %v954 = vmax.f32 %v880, 0.0
  %v955 = vmax.f32 %v883, 0.0
  %v956 = vmax.f32 %v885, 0.0
  %v957 = vmax.f32 %v888, 0.0
  %v958 = vmax.f32 %v890, 0.0
  %v959 = vmax.f32 %v893, 0.0
  %v960 = vmax.f32 %v895, 0.0
  %v961 = vpack.c.bf16 %v897, %v897
  %v962 = vpack.c.bf16 %v898, %v898
  %v963 = vpack.c.bf16 %v899, %v899
  %v964 = vpack.c.bf16 %v900, %v900
  %v965 = vpack.c.bf16 %v901, %v901
  %v966 = vpack.c.bf16 %v902, %v902
  %v967 = vpack.c.bf16 %v903, %v903
  %v968 = vpack.c.bf16 %v904, %v904
  %v969 = vpack.c.bf16 %v905, %v905
  %v970 = vpack.c.bf16 %v906, %v906
  %v971 = vpack.c.bf16 %v907, %v907
  %v972 = vpack.c.bf16 %v908, %v908
  %v973 = vpack.c.bf16 %v909, %v909
  %v974 = vpack.c.bf16 %v910, %v910
  %v975 = vpack.c.bf16 %v911, %v911
  %v976 = vpack.c.bf16 %v912, %v912
  %v977 = vpack.c.bf16 %v913, %v913
  %v978 = vpack.c.bf16 %v914, %v914
  %v979 = vpack.c.bf16 %v915, %v915
  %v980 = vpack.c.bf16 %v916, %v916
  %v981 = vpack.c.bf16 %v917, %v917
  %v982 = vpack.c.bf16 %v918, %v918
  %v983 = vpack.c.bf16 %v919, %v919
  %v984 = vpack.c.bf16 %v920, %v920
  %v985 = vpack.c.bf16 %v921, %v921
  %v986 = vpack.c.bf16 %v922, %v922
  %v987 = vpack.c.bf16 %v923, %v923
  %v988 = vpack.c.bf16 %v924, %v924
  %v989 = vpack.c.bf16 %v925, %v925
  %v990 = vpack.c.bf16 %v926, %v926
  %v991 = vpack.c.bf16 %v927, %v927
  %v992 = vpack.c.bf16 %v928, %v928
  %v993 = vpack.c.bf16 %v929, %v929
  %v994 = vpack.c.bf16 %v930, %v930
  %v995 = vpack.c.bf16 %v931, %v931
  %v996 = vpack.c.bf16 %v932, %v932
  %v997 = vpack.c.bf16 %v933, %v933
  %v998 = vpack.c.bf16 %v934, %v934
  %v999 = vpack.c.bf16 %v935, %v935
  %v1000 = vpack.c.bf16 %v936, %v936
  %v1001 = vpack.c.bf16 %v937, %v937
  %v1002 = vpack.c.bf16 %v938, %v938
  %v1003 = vpack.c.bf16 %v939, %v939
  %v1004 = vpack.c.bf16 %v940, %v940
  %v1005 = vpack.c.bf16 %v941, %v941
  %v1006 = vpack.c.bf16 %v942, %v942
  %v1007 = vpack.c.bf16 %v943, %v943
  %v1008 = vpack.c.bf16 %v944, %v944
  %v1009 = vpack.c.bf16 %v945, %v945
  %v1010 = vpack.c.bf16 %v946, %v946
  %v1011 = vpack.c.bf16 %v947, %v947
  %v1012 = vpack.c.bf16 %v948, %v948
  %v1013 = vpack.c.bf16 %v949, %v949
  %v1014 = vpack.c.bf16 %v950, %v950
  %v1015 = vpack.c.bf16 %v951, %v951
  %v1016 = vpack.c.bf16 %v952, %v952
  %v1017 = vpack.c.bf16 %v953, %v953
  %v1018 = vpack.c.bf16 %v954, %v954
  %v1019 = vpack.c.bf16 %v955, %v955
  %v1020 = vpack.c.bf16 %v956, %v956
  %v1021 = vpack.c.bf16 %v957, %v957
  %v1022 = vpack.c.bf16 %v958, %v958
  %v1023 = vpack.c.bf16 %v959, %v959
  %v1024 = vpack.c.bf16 %v960, %v960
  %vm1025 = vcmask 11264
  %1026 = vst.msk [vmem:[%s3] sm:$0xf] %vm1025, %v961
  %1027 = vst.msk [vmem:[%s3 + $0x4] sm:$0xf] %vm1025, %v962
  %1028 = vst.msk [vmem:[%s3 + $0x8] sm:$0xf] %vm1025, %v963
  %1029 = vst.msk [vmem:[%s3 + $0xc] sm:$0xf] %vm1025, %v964
  %1030 = vst.msk [vmem:[%s3 + $0x10] sm:$0xf] %vm1025, %v965
  %1031 = vst.msk [vmem:[%s3 + $0x14] sm:$0xf] %vm1025, %v966
  %1032 = vst.msk [vmem:[%s3 + $0x18] sm:$0xf] %vm1025, %v967
  %1033 = vst.msk [vmem:[%s3 + $0x1c] sm:$0xf] %vm1025, %v968
  %1034 = vst.msk [vmem:[%s3 + $0x20] sm:$0xf] %vm1025, %v969
  %1035 = vst.msk [vmem:[%s3 + $0x24] sm:$0xf] %vm1025, %v970
  %1036 = vst.msk [vmem:[%s3 + $0x28] sm:$0xf] %vm1025, %v971
  %1037 = vst.msk [vmem:[%s3 + $0x2c] sm:$0xf] %vm1025, %v972
  %1038 = vst.msk [vmem:[%s3 + $0x30] sm:$0xf] %vm1025, %v973
  %1039 = vst.msk [vmem:[%s3 + $0x34] sm:$0xf] %vm1025, %v974
  %1040 = vst.msk [vmem:[%s3 + $0x38] sm:$0xf] %vm1025, %v975
  %1041 = vst.msk [vmem:[%s3 + $0x3c] sm:$0xf] %vm1025, %v976
  %1042 = vst.msk [vmem:[%s3 + $0x40] sm:$0xf] %vm1025, %v977
  %1043 = vst.msk [vmem:[%s3 + $0x44] sm:$0xf] %vm1025, %v978
  %1044 = vst.msk [vmem:[%s3 + $0x48] sm:$0xf] %vm1025, %v979
  %1045 = vst.msk [vmem:[%s3 + $0x4c] sm:$0xf] %vm1025, %v980
  %1046 = vst.msk [vmem:[%s3 + $0x50] sm:$0xf] %vm1025, %v981
  %1047 = vst.msk [vmem:[%s3 + $0x54] sm:$0xf] %vm1025, %v982
  %1048 = vst.msk [vmem:[%s3 + $0x58] sm:$0xf] %vm1025, %v983
  %1049 = vst.msk [vmem:[%s3 + $0x5c] sm:$0xf] %vm1025, %v984
  %1050 = vst.msk [vmem:[%s3 + $0x60] sm:$0xf] %vm1025, %v985
  %1051 = vst.msk [vmem:[%s3 + $0x64] sm:$0xf] %vm1025, %v986
  %1052 = vst.msk [vmem:[%s3 + $0x68] sm:$0xf] %vm1025, %v987
  %1053 = vst.msk [vmem:[%s3 + $0x6c] sm:$0xf] %vm1025, %v988
  %1054 = vst.msk [vmem:[%s3 + $0x70] sm:$0xf] %vm1025, %v989
  %1055 = vst.msk [vmem:[%s3 + $0x74] sm:$0xf] %vm1025, %v990
  %1056 = vst.msk [vmem:[%s3 + $0x78] sm:$0xf] %vm1025, %v991
  %1057 = vst.msk [vmem:[%s3 + $0x7c] sm:$0xf] %vm1025, %v992
  %1058 = vst.msk [vmem:[%s3 + $0x80] sm:$0xf] %vm1025, %v993
  %1059 = vst.msk [vmem:[%s3 + $0x84] sm:$0xf] %vm1025, %v994
  %1060 = vst.msk [vmem:[%s3 + $0x88] sm:$0xf] %vm1025, %v995
  %1061 = vst.msk [vmem:[%s3 + $0x8c] sm:$0xf] %vm1025, %v996
  %1062 = vst.msk [vmem:[%s3 + $0x90] sm:$0xf] %vm1025, %v997
  %1063 = vst.msk [vmem:[%s3 + $0x94] sm:$0xf] %vm1025, %v998
  %1064 = vst.msk [vmem:[%s3 + $0x98] sm:$0xf] %vm1025, %v999
  %1065 = vst.msk [vmem:[%s3 + $0x9c] sm:$0xf] %vm1025, %v1000
  %1066 = vst.msk [vmem:[%s3 + $0xa0] sm:$0xf] %vm1025, %v1001
  %1067 = vst.msk [vmem:[%s3 + $0xa4] sm:$0xf] %vm1025, %v1002
  %1068 = vst.msk [vmem:[%s3 + $0xa8] sm:$0xf] %vm1025, %v1003
  %1069 = vst.msk [vmem:[%s3 + $0xac] sm:$0xf] %vm1025, %v1004
  %1070 = vst.msk [vmem:[%s3 + $0xb0] sm:$0xf] %vm1025, %v1005
  %1071 = vst.msk [vmem:[%s3 + $0xb4] sm:$0xf] %vm1025, %v1006
  %1072 = vst.msk [vmem:[%s3 + $0xb8] sm:$0xf] %vm1025, %v1007
  %1073 = vst.msk [vmem:[%s3 + $0xbc] sm:$0xf] %vm1025, %v1008
  %1074 = vst.msk [vmem:[%s3 + $0xc0] sm:$0xf] %vm1025, %v1009
  %1075 = vst.msk [vmem:[%s3 + $0xc4] sm:$0xf] %vm1025, %v1010
  %1076 = vst.msk [vmem:[%s3 + $0xc8] sm:$0xf] %vm1025, %v1011
  %1077 = vst.msk [vmem:[%s3 + $0xcc] sm:$0xf] %vm1025, %v1012
  %1078 = vst.msk [vmem:[%s3 + $0xd0] sm:$0xf] %vm1025, %v1013
  %1079 = vst.msk [vmem:[%s3 + $0xd4] sm:$0xf] %vm1025, %v1014
  %1080 = vst.msk [vmem:[%s3 + $0xd8] sm:$0xf] %vm1025, %v1015
  %1081 = vst.msk [vmem:[%s3 + $0xdc] sm:$0xf] %vm1025, %v1016
  %1082 = vst.msk [vmem:[%s3 + $0xe0] sm:$0xf] %vm1025, %v1017
  %1083 = vst.msk [vmem:[%s3 + $0xe4] sm:$0xf] %vm1025, %v1018
  %1084 = vst.msk [vmem:[%s3 + $0xe8] sm:$0xf] %vm1025, %v1019
  %1085 = vst.msk [vmem:[%s3 + $0xec] sm:$0xf] %vm1025, %v1020
  %1086 = vst.msk [vmem:[%s3 + $0xf0] sm:$0xf] %vm1025, %v1021
  %1087 = vst.msk [vmem:[%s3 + $0xf4] sm:$0xf] %vm1025, %v1022
  %1088 = vst.msk [vmem:[%s3 + $0xf8] sm:$0xf] %vm1025, %v1023
  %1089 = vst.msk [vmem:[%s3 + $0xfc] sm:$0xf] %vm1025, %v1024
  // Predicated region
  $region14: #{wgan_g_forward.4} parent=0 // pred_check
    _
  $region15: #{wgan_g_forward.4} parent=0 // pred_check_branch
    %1091 = sbr.rel (0) target = $region17
  $region16: #{wgan_g_forward.4} parent=0 // pred_region
    _
  $region17: #{wgan_g_forward.4} parent=0 // pred_fallthru
    _
  // Predicated region
  $region18: #{wgan_g_forward.4} parent=0 // pred_check
    _
  $region19: #{wgan_g_forward.4} parent=0 // pred_check_branch
    %1093 = sbr.rel (0) target = $region21
  $region20: #{wgan_g_forward.4} parent=0 // pred_region
    _
  $region21: #{wgan_g_forward.4} parent=0 // pred_fallthru
    _

// kernel: wgan_g_forward.5
$region0: #{wgan_g_forward.5}
  #allocation0 [shape = 'u32[]', space=smem, size = 0x4, offset = 0x4, fixed_abs, tag = 'smem constant byte address 0x4 - core index']
  #allocation1 [shape = 'u32[72,128]{1,0:T(1,128)}', space=vmem, size = 0x9000, scoped, tag = 'internal scratch']
  %s0 = inlined_call_operand.vmem [shape: bf16[16,288], index: 0, kind: input, shape index: {}]
  %s1 = inlined_call_operand.vmem [shape: bf16[288,128], index: 1, kind: input, shape index: {}]
  %s2 = inlined_call_operand.vmem [shape: bf16[16,128], index: 2, kind: output, shape index: {}]
  %s3 = sld [smem:[#allocation0]]
  $region18: #{wgan_g_forward.5} parent=0
    _
  %s5 = ssub.s32 1, %s3
  %s6 = scalar_select 0, %s5, %s3
  // Predicated region
  $region2: #{wgan_g_forward.5} parent=0 // pred_check
    _
  $region3: #{wgan_g_forward.5} parent=0 // pred_check_branch
    %8 = sbr.rel (0) target = $region5
  $region4: #{wgan_g_forward.5} parent=0 // pred_region
    _
  $region5: #{wgan_g_forward.5} parent=0 // pred_fallthru
    _
  // Predicated region
  $region6: #{wgan_g_forward.5} parent=0 // pred_check
    _
  $region7: #{wgan_g_forward.5} parent=0 // pred_check_branch
    %10 = sbr.rel (0) target = $region9
  $region8: #{wgan_g_forward.5} parent=0 // pred_region
    _
  $region9: #{wgan_g_forward.5} parent=0 // pred_fallthru
    _
  %v12 = vld [vmem:[%s0] sm:$0xff]
  %v13 = vld [vmem:[%s0 + $0x8] sm:$0xf]
  %v14 = vld [vmem:[%s0 + $0xc] sm:$0xff]
  %v15 = vld [vmem:[%s0 + $0x14] sm:$0xf]
  %v16 = vld [vmem:[%s1] sm:$0xf]
  %v17 = vld [vmem:[%s1 + $0x4] sm:$0xf]
  %v18 = vld [vmem:[%s1 + $0x8] sm:$0xf]
  %v19 = vld [vmem:[%s1 + $0xc] sm:$0xf]
  %v20 = vld [vmem:[%s1 + $0x10] sm:$0xf]
  %v21 = vld [vmem:[%s1 + $0x14] sm:$0xf]
  %v22 = vld [vmem:[%s1 + $0x18] sm:$0xf]
  %v23 = vld [vmem:[%s1 + $0x1c] sm:$0xf]
  %v24 = vld [vmem:[%s1 + $0x20] sm:$0xf]
  %v25 = vld [vmem:[%s1 + $0x24] sm:$0xf]
  %v26 = vld [vmem:[%s1 + $0x28] sm:$0xf]
  %v27 = vld [vmem:[%s1 + $0x2c] sm:$0xf]
  %v28 = vld [vmem:[%s1 + $0x30] sm:$0xf]
  %v29 = vld [vmem:[%s1 + $0x34] sm:$0xf]
  %v30 = vld [vmem:[%s1 + $0x38] sm:$0xf]
  %v31 = vld [vmem:[%s1 + $0x3c] sm:$0xf]
  %v32 = vld [vmem:[%s1 + $0x40] sm:$0xf]
  %v33 = vld [vmem:[%s1 + $0x44] sm:$0xf]
  %v34 = vld [vmem:[%s1 + $0x48] sm:$0xf]
  %v35 = vld [vmem:[%s1 + $0x4c] sm:$0xf]
  %v36 = vld [vmem:[%s1 + $0x50] sm:$0xf]
  %v37 = vld [vmem:[%s1 + $0x54] sm:$0xf]
  %v38 = vld [vmem:[%s1 + $0x58] sm:$0xf]
  %v39 = vld [vmem:[%s1 + $0x5c] sm:$0xf]
  %v40 = vld [vmem:[%s1 + $0x60] sm:$0xf]
  %v41 = vld [vmem:[%s1 + $0x64] sm:$0xf]
  %v42 = vld [vmem:[%s1 + $0x68] sm:$0xf]
  %v43 = vld [vmem:[%s1 + $0x6c] sm:$0xf]
  %v44 = vld [vmem:[%s1 + $0x70] sm:$0xf]
  %v45 = vld [vmem:[%s1 + $0x74] sm:$0xf]
  %v46 = vld [vmem:[%s1 + $0x78] sm:$0xf]
  %v47 = vld [vmem:[%s1 + $0x7c] sm:$0xf]
  %v48 = vld [vmem:[%s1 + $0x80] sm:$0xf]
  %v49 = vld [vmem:[%s1 + $0x84] sm:$0xf]
  %v50 = vld [vmem:[%s1 + $0x88] sm:$0xf]
  %v51 = vld [vmem:[%s1 + $0x8c] sm:$0xf]
  %v56 = vunpack.c.l.b16 %v12
  %v57 = vunpack.c.h.b16 %v12
  %v58 = vunpack.c.l.b16 %v13
  %v59 = vunpack.c.l.b16 %v14
  %v60 = vunpack.c.h.b16 %v14
  %v61 = vunpack.c.l.b16 %v15
  %v62 = vpack.c.b16 %v59, %v56
  %v63 = vpack.c.b16 %v60, %v57
  %v64 = vpack.c.b16 %v61, %v58
  %v103 = vunpack.c.l.b16 %v16
  %v104 = vunpack.c.l.b16 %v17
  %v105 = vunpack.c.l.b16 %v18
  %v106 = vunpack.c.l.b16 %v19
  %v107 = vunpack.c.l.b16 %v20
  %v108 = vunpack.c.l.b16 %v21
  %v109 = vunpack.c.l.b16 %v22
  %v110 = vunpack.c.l.b16 %v23
  %v111 = vunpack.c.l.b16 %v24
  %v112 = vunpack.c.l.b16 %v25
  %v113 = vunpack.c.l.b16 %v26
  %v114 = vunpack.c.l.b16 %v27
  %v115 = vunpack.c.l.b16 %v28
  %v116 = vunpack.c.l.b16 %v29
  %v117 = vunpack.c.l.b16 %v30
  %v118 = vunpack.c.l.b16 %v31
  %v119 = vunpack.c.l.b16 %v32
  %v120 = vunpack.c.l.b16 %v33
  %v121 = vunpack.c.l.b16 %v34
  %v122 = vunpack.c.l.b16 %v35
  %v123 = vunpack.c.l.b16 %v36
  %v124 = vunpack.c.l.b16 %v37
  %v125 = vunpack.c.l.b16 %v38
  %v126 = vunpack.c.l.b16 %v39
  %v127 = vunpack.c.l.b16 %v40
  %v128 = vunpack.c.l.b16 %v41
  %v129 = vunpack.c.l.b16 %v42
  %v130 = vunpack.c.l.b16 %v43
  %v131 = vunpack.c.l.b16 %v44
  %v132 = vunpack.c.l.b16 %v45
  %v133 = vunpack.c.l.b16 %v46
  %v134 = vunpack.c.l.b16 %v47
  %v135 = vunpack.c.l.b16 %v48
  %v136 = vunpack.c.l.b16 %v49
  %v137 = vunpack.c.l.b16 %v50
  %v138 = vunpack.c.l.b16 %v51
  %v139 = vpack.c.b16 %v104, %v103
  %v140 = vpack.c.b16 %v106, %v105
  %v141 = vpack.c.b16 %v108, %v107
  %v142 = vpack.c.b16 %v110, %v109
  %v143 = vpack.c.b16 %v112, %v111
  %v144 = vpack.c.b16 %v114, %v113
  %v145 = vpack.c.b16 %v116, %v115
  %v146 = vpack.c.b16 %v118, %v117
  %v147 = vpack.c.b16 %v120, %v119
  %v148 = vpack.c.b16 %v122, %v121
  %v149 = vpack.c.b16 %v124, %v123
  %v150 = vpack.c.b16 %v126, %v125
  %v151 = vpack.c.b16 %v128, %v127
  %v152 = vpack.c.b16 %v130, %v129
  %v153 = vpack.c.b16 %v132, %v131
  %v154 = vpack.c.b16 %v134, %v133
  %v155 = vpack.c.b16 %v136, %v135
  %v156 = vpack.c.b16 %v138, %v137
  %vm175 = vcmask 261120
  %v177 = vsel %vm175, %v64, 0
  %179 = vmatpush.bf16.msra.mxu0 %v146
  %180 = vmatpush.bf16.msra.mxu0 %v145
  %181 = vmatpush.bf16.msra.mxu0 %v144
  %182 = vmatpush.bf16.msra.mxu0 %v143
  %183 = vmatpush.bf16.msra.mxu0 %v142
  %184 = vmatpush.bf16.msra.mxu0 %v141
  %185 = vmatpush.bf16.msra.mxu0 %v140
  %186 = vmatpush.bf16.msra.mxu0 %v139
  %187 = vmatmul.bf16.gmra.mxu0 %v62
  %v188 = vpop.f32.mrf.mxu0
  %v189 = vadd.f32 0.0, %v188
  %v190 = vpop.f32.mrf.mxu0
  %v191 = vadd.f32 0.0, %v190
  %192 = vdwg.mxu0
  %193 = vmatpush.bf16.msra.mxu0 %v154
  %194 = vmatpush.bf16.msra.mxu0 %v153
  %195 = vmatpush.bf16.msra.mxu0 %v152
  %196 = vmatpush.bf16.msra.mxu0 %v151
  %197 = vmatpush.bf16.msra.mxu0 %v150
  %198 = vmatpush.bf16.msra.mxu0 %v149
  %199 = vmatpush.bf16.msra.mxu0 %v148
  %200 = vmatpush.bf16.msra.mxu0 %v147
  %201 = vmatmul.bf16.gmra.mxu0 %v63
  %v202 = vpop.f32.mrf.mxu0
  %v203 = vadd.f32 %v189, %v202
  %v204 = vpop.f32.mrf.mxu0
  %v205 = vadd.f32 %v191, %v204
  %206 = vdwg.mxu0
  %207 = vmatpush.bf16.msra.mxu0 0
  %208 = vmatpush.bf16.msra.mxu0 0
  %209 = vmatpush.bf16.msra.mxu0 0
  %210 = vmatpush.bf16.msra.mxu0 0
  %211 = vmatpush.bf16.msra.mxu0 0
  %212 = vmatpush.bf16.msra.mxu0 0
  %213 = vmatpush.bf16.msra.mxu0 %v156
  %214 = vmatpush.bf16.msra.mxu0 %v155
  %215 = vmatmul.bf16.gmra.mxu0 %v177
  %v216 = vpop.f32.mrf.mxu0
  %v217 = vadd.f32 %v203, %v216
  %v218 = vpop.f32.mrf.mxu0
  %v219 = vadd.f32 %v205, %v218
  %220 = vdwg.mxu0
  %v221 = vmax.f32 %v217, 0.0
  %v222 = vmax.f32 %v219, 0.0
  %v223 = vpack.c.bf16 %v221, %v221
  %v224 = vpack.c.bf16 %v222, %v222
  %225 = vst [vmem:[%s2] sm:$0xf] %v223
  %226 = vst [vmem:[%s2 + $0x4] sm:$0xf] %v224
  // Predicated region
  $region10: #{wgan_g_forward.5} parent=0 // pred_check
    _
  $region11: #{wgan_g_forward.5} parent=0 // pred_check_branch
    %228 = sbr.rel (0) target = $region13
  $region12: #{wgan_g_forward.5} parent=0 // pred_region
    _
  $region13: #{wgan_g_forward.5} parent=0 // pred_fallthru
    _
  // Predicated region
  $region14: #{wgan_g_forward.5} parent=0 // pred_check
    _
  $region15: #{wgan_g_forward.5} parent=0 // pred_check_branch
    %230 = sbr.rel (0) target = $region17
  $region16: #{wgan_g_forward.5} parent=0 // pred_region
    _
  $region17: #{wgan_g_forward.5} parent=0 // pred_fallthru
    _

// kernel: wgan_g_forward.6
$region0: #{wgan_g_forward.6}
  #allocation0 [shape = 'u32[]', space=smem, size = 0x4, offset = 0x4, fixed_abs, tag = 'smem constant byte address 0x4 - core index']
  #allocation1 [shape = 'u32[72,128]{1,0:T(1,128)}', space=vmem, size = 0x9000, scoped, tag = 'internal scratch']
  %s0 = inlined_call_operand.vmem [shape: bf16[8,144], index: 0, kind: input, shape index: {}]
  %s1 = inlined_call_operand.vmem [shape: bf16[144,384], index: 1, kind: input, shape index: {}]
  %s2 = inlined_call_operand.vmem [shape: bf16[8,384], index: 2, kind: output, shape index: {}]
  %s3 = sld [smem:[#allocation0]]
  $region18: #{wgan_g_forward.6} parent=0
    _
  %s5 = ssub.s32 1, %s3
  %s6 = scalar_select 0, %s5, %s3
  // Predicated region
  $region2: #{wgan_g_forward.6} parent=0 // pred_check
    _
  $region3: #{wgan_g_forward.6} parent=0 // pred_check_branch
    %8 = sbr.rel (0) target = $region5
  $region4: #{wgan_g_forward.6} parent=0 // pred_region
    _
  $region5: #{wgan_g_forward.6} parent=0 // pred_fallthru
    _
  // Predicated region
  $region6: #{wgan_g_forward.6} parent=0 // pred_check
    _
  $region7: #{wgan_g_forward.6} parent=0 // pred_check_branch
    %10 = sbr.rel (0) target = $region9
  $region8: #{wgan_g_forward.6} parent=0 // pred_region
    _
  $region9: #{wgan_g_forward.6} parent=0 // pred_fallthru
    _
  %v12 = vld [vmem:[%s0] sm:$0xff]
  %v13 = vld [vmem:[%s1] sm:$0xff]
  %v14 = vld [vmem:[%s1 + $0x8] sm:$0xf]
  %v15 = vld [vmem:[%s1 + $0xc] sm:$0xff]
  %v16 = vld [vmem:[%s1 + $0x14] sm:$0xf]
  %v17 = vld [vmem:[%s1 + $0x18] sm:$0xff]
  %v18 = vld [vmem:[%s1 + $0x20] sm:$0xf]
  %v19 = vld [vmem:[%s1 + $0x24] sm:$0xff]
  %v20 = vld [vmem:[%s1 + $0x2c] sm:$0xf]
  %v21 = vld [vmem:[%s1 + $0x30] sm:$0xff]
  %v22 = vld [vmem:[%s1 + $0x38] sm:$0xf]
  %v23 = vld [vmem:[%s1 + $0x3c] sm:$0xff]
  %v24 = vld [vmem:[%s1 + $0x44] sm:$0xf]
  %v25 = vld [vmem:[%s1 + $0x48] sm:$0xff]
  %v26 = vld [vmem:[%s1 + $0x50] sm:$0xf]
  %v27 = vld [vmem:[%s1 + $0x54] sm:$0xff]
  %v28 = vld [vmem:[%s1 + $0x5c] sm:$0xf]
  %v29 = vld [vmem:[%s1 + $0x60] sm:$0xff]
  %v30 = vld [vmem:[%s1 + $0x68] sm:$0xf]
  %v31 = vld [vmem:[%s1 + $0x6c] sm:$0xff]
  %v32 = vld [vmem:[%s1 + $0x74] sm:$0xf]
  %v33 = vld [vmem:[%s1 + $0x78] sm:$0xff]
  %v34 = vld [vmem:[%s1 + $0x80] sm:$0xf]
  %v35 = vld [vmem:[%s1 + $0x84] sm:$0xff]
  %v36 = vld [vmem:[%s1 + $0x8c] sm:$0xf]
  %v37 = vld [vmem:[%s1 + $0x90] sm:$0xff]
  %v38 = vld [vmem:[%s1 + $0x98] sm:$0xf]
  %v39 = vld [vmem:[%s1 + $0x9c] sm:$0xff]
  %v40 = vld [vmem:[%s1 + $0xa4] sm:$0xf]
  %v41 = vld [vmem:[%s1 + $0xa8] sm:$0xff]
  %v42 = vld [vmem:[%s1 + $0xb0] sm:$0xf]
  %v43 = vld [vmem:[%s1 + $0xb4] sm:$0xff]
  %v44 = vld [vmem:[%s1 + $0xbc] sm:$0xf]
  %v45 = vld [vmem:[%s1 + $0xc0] sm:$0xff]
  %v46 = vld [vmem:[%s1 + $0xc8] sm:$0xf]
  %v47 = vld [vmem:[%s1 + $0xcc] sm:$0xff]
  %v48 = vld [vmem:[%s1 + $0xd4] sm:$0xf]
  %v50 = vunpack.c.l.b16 %v12
  %v51 = vunpack.c.h.b16 %v12
  %v52 = vpack.c.b16 %v50, %v50
  %v53 = vpack.c.b16 %v51, %v51
  %v91 = vunpack.c.l.b16 %v13
  %v92 = vunpack.c.h.b16 %v13
  %v93 = vunpack.c.l.b16 %v14
  %v94 = vunpack.c.l.b16 %v15
  %v95 = vunpack.c.h.b16 %v15
  %v96 = vunpack.c.l.b16 %v16
  %v97 = vunpack.c.l.b16 %v17
  %v98 = vunpack.c.h.b16 %v17
  %v99 = vunpack.c.l.b16 %v18
  %v100 = vunpack.c.l.b16 %v19
  %v101 = vunpack.c.h.b16 %v19
  %v102 = vunpack.c.l.b16 %v20
  %v103 = vunpack.c.l.b16 %v21
  %v104 = vunpack.c.h.b16 %v21
  %v105 = vunpack.c.l.b16 %v22
  %v106 = vunpack.c.l.b16 %v23
  %v107 = vunpack.c.h.b16 %v23
  %v108 = vunpack.c.l.b16 %v24
  %v109 = vunpack.c.l.b16 %v25
  %v110 = vunpack.c.h.b16 %v25
  %v111 = vunpack.c.l.b16 %v26
  %v112 = vunpack.c.l.b16 %v27
  %v113 = vunpack.c.h.b16 %v27
  %v114 = vunpack.c.l.b16 %v28
  %v115 = vunpack.c.l.b16 %v29
  %v116 = vunpack.c.h.b16 %v29
  %v117 = vunpack.c.l.b16 %v30
  %v118 = vunpack.c.l.b16 %v31
  %v119 = vunpack.c.h.b16 %v31
  %v120 = vunpack.c.l.b16 %v32
  %v121 = vunpack.c.l.b16 %v33
  %v122 = vunpack.c.h.b16 %v33
  %v123 = vunpack.c.l.b16 %v34
  %v124 = vunpack.c.l.b16 %v35
  %v125 = vunpack.c.h.b16 %v35
  %v126 = vunpack.c.l.b16 %v36
  %v127 = vunpack.c.l.b16 %v37
  %v128 = vunpack.c.h.b16 %v37
  %v129 = vunpack.c.l.b16 %v38
  %v130 = vunpack.c.l.b16 %v39
  %v131 = vunpack.c.h.b16 %v39
  %v132 = vunpack.c.l.b16 %v40
  %v133 = vunpack.c.l.b16 %v41
  %v134 = vunpack.c.h.b16 %v41
  %v135 = vunpack.c.l.b16 %v42
  %v136 = vunpack.c.l.b16 %v43
  %v137 = vunpack.c.h.b16 %v43
  %v138 = vunpack.c.l.b16 %v44
  %v139 = vunpack.c.l.b16 %v45
  %v140 = vunpack.c.h.b16 %v45
  %v141 = vunpack.c.l.b16 %v46
  %v142 = vunpack.c.l.b16 %v47
  %v143 = vunpack.c.h.b16 %v47
  %v144 = vunpack.c.l.b16 %v48
  %v145 = vpack.c.b16 %v94, %v91
  %v146 = vpack.c.b16 %v95, %v92
  %v147 = vpack.c.b16 %v96, %v93
  %v148 = vpack.c.b16 %v100, %v97
  %v149 = vpack.c.b16 %v101, %v98
  %v150 = vpack.c.b16 %v102, %v99
  %v151 = vpack.c.b16 %v106, %v103
  %v152 = vpack.c.b16 %v107, %v104
  %v153 = vpack.c.b16 %v108, %v105
  %v154 = vpack.c.b16 %v112, %v109
  %v155 = vpack.c.b16 %v113, %v110
  %v156 = vpack.c.b16 %v114, %v111
  %v157 = vpack.c.b16 %v118, %v115
  %v158 = vpack.c.b16 %v119, %v116
  %v159 = vpack.c.b16 %v120, %v117
  %v160 = vpack.c.b16 %v124, %v121
  %v161 = vpack.c.b16 %v125, %v122
  %v162 = vpack.c.b16 %v126, %v123
  %v163 = vpack.c.b16 %v130, %v127
  %v164 = vpack.c.b16 %v131, %v128
  %v165 = vpack.c.b16 %v132, %v129
  %v166 = vpack.c.b16 %v136, %v133
  %v167 = vpack.c.b16 %v137, %v134
  %v168 = vpack.c.b16 %v138, %v135
  %v169 = vpack.c.b16 %v142, %v139
  %v170 = vpack.c.b16 %v143, %v140
  %v171 = vpack.c.b16 %v144, %v141
  %vm199 = vcmask 130048
  %v201 = vsel %vm199, %v53, 0
  %203 = vmatpush.bf16.msra.mxu0 %v166
  %204 = vmatpush.bf16.msra.mxu0 %v163
  %205 = vmatpush.bf16.msra.mxu0 %v160
  %206 = vmatpush.bf16.msra.mxu0 %v157
  %207 = vmatpush.bf16.msra.mxu0 %v154
  %208 = vmatpush.bf16.msra.mxu0 %v151
  %209 = vmatpush.bf16.msra.mxu0 %v148
  %210 = vmatpush.bf16.msra.mxu0 %v145
  %211 = vmatmul.bf16.gmra.mxu0 %v52
  %v212 = vpop.f32.mrf.mxu0
  %v213 = vadd.f32 0.0, %v212
  %v214 = vpop.f32.mrf.mxu0
  %215 = vdwg.mxu0
  %216 = vmatpush.bf16.msra.mxu0 0
  %217 = vmatpush.bf16.msra.mxu0 0
  %218 = vmatpush.bf16.msra.mxu0 0
  %219 = vmatpush.bf16.msra.mxu0 0
  %220 = vmatpush.bf16.msra.mxu0 0
  %221 = vmatpush.bf16.msra.mxu0 0
  %222 = vmatpush.bf16.msra.mxu0 0
  %223 = vmatpush.bf16.msra.mxu0 %v169
  %224 = vmatmul.bf16.gmra.mxu0 %v201
  %v225 = vpop.f32.mrf.mxu0
  %v226 = vadd.f32 %v213, %v225
  %v227 = vpop.f32.mrf.mxu0
  %228 = vdwg.mxu0
  %229 = vmatpush.bf16.msra.mxu0 %v167
  %230 = vmatpush.bf16.msra.mxu0 %v164
  %231 = vmatpush.bf16.msra.mxu0 %v161
  %232 = vmatpush.bf16.msra.mxu0 %v158
  %233 = vmatpush.bf16.msra.mxu0 %v155
  %234 = vmatpush.bf16.msra.mxu0 %v152
  %235 = vmatpush.bf16.msra.mxu0 %v149
  %236 = vmatpush.bf16.msra.mxu0 %v146
  %237 = vmatmul.bf16.gmra.mxu0 %v52
  %v238 = vpop.f32.mrf.mxu0
  %v239 = vadd.f32 0.0, %v238
  %v240 = vpop.f32.mrf.mxu0
  %241 = vdwg.mxu0
  %242 = vmatpush.bf16.msra.mxu0 0
  %243 = vmatpush.bf16.msra.mxu0 0
  %244 = vmatpush.bf16.msra.mxu0 0
  %245 = vmatpush.bf16.msra.mxu0 0
  %246 = vmatpush.bf16.msra.mxu0 0
  %247 = vmatpush.bf16.msra.mxu0 0
  %248 = vmatpush.bf16.msra.mxu0 0
  %249 = vmatpush.bf16.msra.mxu0 %v170
  %250 = vmatmul.bf16.gmra.mxu0 %v201
  %v251 = vpop.f32.mrf.mxu0
  %v252 = vadd.f32 %v239, %v251
  %v253 = vpop.f32.mrf.mxu0
  %254 = vdwg.mxu0
  %255 = vmatpush.bf16.msra.mxu0 %v168
  %256 = vmatpush.bf16.msra.mxu0 %v165
  %257 = vmatpush.bf16.msra.mxu0 %v162
  %258 = vmatpush.bf16.msra.mxu0 %v159
  %259 = vmatpush.bf16.msra.mxu0 %v156
  %260 = vmatpush.bf16.msra.mxu0 %v153
  %261 = vmatpush.bf16.msra.mxu0 %v150
  %262 = vmatpush.bf16.msra.mxu0 %v147
  %263 = vmatmul.bf16.gmra.mxu0 %v52
  %v264 = vpop.f32.mrf.mxu0
  %v265 = vadd.f32 0.0, %v264
  %v266 = vpop.f32.mrf.mxu0
  %267 = vdwg.mxu0
  %268 = vmatpush.bf16.msra.mxu0 0
  %269 = vmatpush.bf16.msra.mxu0 0
  %270 = vmatpush.bf16.msra.mxu0 0
  %271 = vmatpush.bf16.msra.mxu0 0
  %272 = vmatpush.bf16.msra.mxu0 0
  %273 = vmatpush.bf16.msra.mxu0 0
  %274 = vmatpush.bf16.msra.mxu0 0
  %275 = vmatpush.bf16.msra.mxu0 %v171
  %276 = vmatmul.bf16.gmra.mxu0 %v201
  %v277 = vpop.f32.mrf.mxu0
  %v278 = vadd.f32 %v265, %v277
  %v279 = vpop.f32.mrf.mxu0
  %280 = vdwg.mxu0
  %v281 = vmax.f32 %v226, 0.0
  %v282 = vmax.f32 %v252, 0.0
  %v283 = vmax.f32 %v278, 0.0
  %v284 = vpack.c.bf16 %v282, %v281
  %v285 = vpack.c.bf16 %v283, %v283
  %286 = vst [vmem:[%s2] sm:$0xff] %v284
  %287 = vst [vmem:[%s2 + $0x8] sm:$0xf] %v285
  // Predicated region
  $region10: #{wgan_g_forward.6} parent=0 // pred_check
    _
  $region11: #{wgan_g_forward.6} parent=0 // pred_check_branch
    %289 = sbr.rel (0) target = $region13
  $region12: #{wgan_g_forward.6} parent=0 // pred_region
    _
  $region13: #{wgan_g_forward.6} parent=0 // pred_fallthru
    _
  // Predicated region
  $region14: #{wgan_g_forward.6} parent=0 // pred_check
    _
  $region15: #{wgan_g_forward.6} parent=0 // pred_check_branch
    %291 = sbr.rel (0) target = $region17
  $region16: #{wgan_g_forward.6} parent=0 // pred_region
    _
  $region17: #{wgan_g_forward.6} parent=0 // pred_fallthru
    _

// kernel: wgan_g_forward.7
$region0: #{wgan_g_forward.7}
  #allocation0 [shape = 'u32[]', space=smem, size = 0x4, offset = 0x4, fixed_abs, tag = 'smem constant byte address 0x4 - core index']
  #allocation1 [shape = 'u32[72,128]{1,0:T(1,128)}', space=vmem, size = 0x9000, scoped, tag = 'internal scratch']
  %s0 = inlined_call_operand.vmem [shape: bf16[1,128], index: 0, kind: input, shape index: {}]
  %s1 = inlined_call_operand.vmem [shape: bf16[128,2048], index: 1, kind: input, shape index: {}]
  %s2 = inlined_call_operand.vmem [shape: f32[1,2048], index: 2, kind: output, shape index: {}]
  %s3 = sld [smem:[#allocation0]]
  $region64: #{wgan_g_forward.7} parent=0
    _
  %s5 = ssub.s32 1, %s3
  %s6 = scalar_select 0, %s5, %s3
  $region1: #{wgan_g_forward.7} parent=0
    #allocation2 [shape = 'u8[262144]{0}', space=vmem, size = 0x40000, scoped, tag = 'input window, operand 1']
    loop: start=0, step=1, limit=6
    $region2: #{wgan_g_forward.7} parent=1 // loop_pre_header
      _
    $region3: #{wgan_g_forward.7} parent=1 // loop_header
      %s8 = sphi 0, %s12
      %p9 = scmp.ge.s32.totalorder %s8, 6
      %s16 = sphi 0, %s16
      %s18 = sphi 0, %s16
      %s19 = sphi 0, %s18
      %s33 = sphi 0, %s19
      %s39 = sphi 0, %s41
      %s42 = sphi 0, %s39
      %s43 = sphi 0, %s42
      %s59 = sphi 0, %s43
      %s65 = sphi 0, %s67
      %s68 = sphi 0, %s65
      %s69 = sphi 0, %s68
      %s85 = sphi 0, %s69
    $region4: #{wgan_g_forward.7} parent=1 // loop_header_branch
      %11 = sbr.rel (%p9) target = $region8
    $region5: #{wgan_g_forward.7} parent=1 // loop_body
      %s13 = ssub.s32 %s8, 1
      %s14 = ssub.s32 %s8, 2
      %s15 = sadd.s32 %s8, 1
      %s17 = sadd.s32 %s16, 1
      %p20 = scmp.eq.s32.totalorder %s8, 3
      %p21 = scmp.ne.s32.totalorder %s16, %s18
      %p22 = scmp.eq.s32.totalorder %s8, 0
      %p23 = por %p21, %p22
      %p24 = scmp.ne.s32.totalorder %s16, %s18
      %p25 = scmp.eq.s32.totalorder %s13, 3
      %p26 = por %p24, %p25
      %p27 = scmp.ne.s32.totalorder %s18, %s19
      %p28 = scmp.eq.s32.totalorder %s13, 0
      %p29 = por %p27, %p28
      %p30 = scmp.ne.s32.totalorder %s18, %s19
      %p31 = scmp.eq.s32.totalorder %s14, 3
      %p32 = por %p30, %p31
      %p34 = scmp.ne.s32.totalorder %s19, %s33
      %p35 = scmp.eq.s32.totalorder %s14, 0
      %p36 = por %p34, %p35
      %s37 = ssub.s32 %s8, %s15
      %p38 = scmp.eq.s32.totalorder %s37, 0
      %s40 = sadd.s32 %s39, 1
      %s41 = scalar_select %p38, %s39, %s40
      %p44 = pneg %p38
      %p45 = scmp.eq.s32.totalorder %s8, 3
      %p46 = por %p44, %p45
      %p47 = scmp.ne.s32.totalorder %s39, %s42
      %p48 = scmp.eq.s32.totalorder %s8, 0
      %p49 = por %p47, %p48
      %p50 = scmp.ne.s32.totalorder %s39, %s42
      %p51 = scmp.eq.s32.totalorder %s13, 3
      %p52 = por %p50, %p51
      %p53 = scmp.ne.s32.totalorder %s42, %s43
      %p54 = scmp.eq.s32.totalorder %s13, 0
      %p55 = por %p53, %p54
      %p56 = scmp.ne.s32.totalorder %s42, %s43
      %p57 = scmp.eq.s32.totalorder %s14, 3
      %p58 = por %p56, %p57
      %p60 = scmp.ne.s32.totalorder %s43, %s59
      %p61 = scmp.eq.s32.totalorder %s14, 0
      %p62 = por %p60, %p61
      %s63 = ssub.s32 %s8, %s15
      %p64 = scmp.eq.s32.totalorder %s63, 0
      %s66 = sadd.s32 %s65, 1
      %s67 = scalar_select %p64, %s65, %s66
      %p70 = pneg %p64
      %p71 = scmp.eq.s32.totalorder %s8, 3
      %p72 = por %p70, %p71
      %p73 = scmp.ne.s32.totalorder %s65, %s68
      %p74 = scmp.eq.s32.totalorder %s8, 0
      %p75 = por %p73, %p74
      %p76 = scmp.ne.s32.totalorder %s65, %s68
      %p77 = scmp.eq.s32.totalorder %s13, 3
      %p78 = por %p76, %p77
      %p79 = scmp.ne.s32.totalorder %s68, %s69
      %p80 = scmp.eq.s32.totalorder %s13, 0
      %p81 = por %p79, %p80
      %p82 = scmp.ne.s32.totalorder %s68, %s69
      %p83 = scmp.eq.s32.totalorder %s14, 3
      %p84 = por %p82, %p83
      %p86 = scmp.ne.s32.totalorder %s69, %s85
      %p87 = scmp.eq.s32.totalorder %s14, 0
      %p88 = por %p86, %p87
      %p89 = scmp.le.s32.totalorder 1, %s8
      %p90 = scmp.lt.s32.totalorder %s8, 5
      %p91 = pnand %p89, %p90
      %p92 = pneg %p91
      // Predicated region
      $region9: #{wgan_g_forward.7} parent=5 // pred_check
        _
      $region10: #{wgan_g_forward.7} parent=5 // pred_check_branch
        %94 = sbr.rel (%p91) target = $region12
      $region11: #{wgan_g_forward.7} parent=5 // pred_region
        %s95 = ssub.s32 %s8, 1
        // Predicated region
        $region13: #{wgan_g_forward.7} parent=11 // pred_check
          %p96 = pneg %p29
        $region14: #{wgan_g_forward.7} parent=11 // pred_check_branch
          %98 = sbr.rel (%p96) target = $region16
        $region15: #{wgan_g_forward.7} parent=11 // pred_region
          _
        $region16: #{wgan_g_forward.7} parent=11 // pred_fallthru
          _
      $region12: #{wgan_g_forward.7} parent=5 // pred_fallthru
        _
      %p99 = scmp.lt.s32.totalorder %s8, 4
      // Predicated region
      $region17: #{wgan_g_forward.7} parent=5 // pred_check
        %p100 = pneg %p99
      $region18: #{wgan_g_forward.7} parent=5 // pred_check_branch
        %102 = sbr.rel (%p100) target = $region20
      $region19: #{wgan_g_forward.7} parent=5 // pred_region
        // Predicated region
        $region21: #{wgan_g_forward.7} parent=19 // pred_check
          %p103 = pneg %p49
        $region22: #{wgan_g_forward.7} parent=19 // pred_check_branch
          %105 = sbr.rel (%p103) target = $region24
        $region23: #{wgan_g_forward.7} parent=19 // pred_region
          %s106 = sand.u32 %s39, 1
          %s107 = sand.u32 %s39, 1
          %s108 = smul.addr %s107, 256
          %s109 = scalar_lea.vmem [#allocation2], %s108
          %s110 = smul.u32 4, %s8
          %s111 = smul.addr %s110, 4
          %s112 = scalar_lea.vmem %s1, %s111
          // Predicated region
          $region25: #{wgan_g_forward.7} parent=23 // pred_check
            _
          $region26: #{wgan_g_forward.7} parent=23 // pred_check_branch
            %114 = sbr.rel (0) target = $region28
          $region27: #{wgan_g_forward.7} parent=23 // pred_region
            // Predicated region
            $region29: #{wgan_g_forward.7} parent=27 // pred_check
              _
            $region30: #{wgan_g_forward.7} parent=27 // pred_check_branch
              %116 = sbr.rel (0) target = $region32
            $region31: #{wgan_g_forward.7} parent=27 // pred_region
              loop: start=0, step=1, limit=1
              $region33: #{wgan_g_forward.7} parent=31 // loop_pre_header
                _
              $region34: #{wgan_g_forward.7} parent=31 // loop_header
                %s118 = sphi 0, %s122
                %p119 = scmp.ge.s32.totalorder %s118, 1
                %s123 = sphi %s112, %s112
                %s124 = sphi %s109, %s109
              $region35: #{wgan_g_forward.7} parent=31 // loop_header_branch
                %121 = sbr.rel (%p119) target = $region39
              $region36: #{wgan_g_forward.7} parent=31 // loop_body
                %v125 = vld [vmem:[%s123] sm:$0xff]
                %126 = vst [vmem:[%s124] sm:$0xff] %v125
                %v127 = vld [vmem:[%s123 + $0x8] sm:$0xff]
                %128 = vst [vmem:[%s124 + $0x8] sm:$0xff] %v127
                %v129 = vld [vmem:[%s123 + $0x40] sm:$0xff]
                %130 = vst [vmem:[%s124 + $0x10] sm:$0xff] %v129
                %v131 = vld [vmem:[%s123 + $0x48] sm:$0xff]
                %132 = vst [vmem:[%s124 + $0x18] sm:$0xff] %v131
                %v133 = vld [vmem:[%s123 + $0x80] sm:$0xff]
                %134 = vst [vmem:[%s124 + $0x20] sm:$0xff] %v133
                %v135 = vld [vmem:[%s123 + $0x88] sm:$0xff]
                %136 = vst [vmem:[%s124 + $0x28] sm:$0xff] %v135
                %v137 = vld [vmem:[%s123 + $0xc0] sm:$0xff]
                %138 = vst [vmem:[%s124 + $0x30] sm:$0xff] %v137
                %v139 = vld [vmem:[%s123 + $0xc8] sm:$0xff]
                %140 = vst [vmem:[%s124 + $0x38] sm:$0xff] %v139
                %v141 = vld [vmem:[%s123 + $0x100] sm:$0xff]
                %142 = vst [vmem:[%s124 + $0x40] sm:$0xff] %v141
                %v143 = vld [vmem:[%s123 + $0x108] sm:$0xff]
                %144 = vst [vmem:[%s124 + $0x48] sm:$0xff] %v143
                %v145 = vld [vmem:[%s123 + $0x140] sm:$0xff]
                %146 = vst [vmem:[%s124 + $0x50] sm:$0xff] %v145
                %v147 = vld [vmem:[%s123 + $0x148] sm:$0xff]
                %148 = vst [vmem:[%s124 + $0x58] sm:$0xff] %v147
                %v149 = vld [vmem:[%s123 + $0x180] sm:$0xff]
                %150 = vst [vmem:[%s124 + $0x60] sm:$0xff] %v149
                %v151 = vld [vmem:[%s123 + $0x188] sm:$0xff]
                %152 = vst [vmem:[%s124 + $0x68] sm:$0xff] %v151
                %v153 = vld [vmem:[%s123 + $0x1c0] sm:$0xff]
                %154 = vst [vmem:[%s124 + $0x70] sm:$0xff] %v153
                %v155 = vld [vmem:[%s123 + $0x1c8] sm:$0xff]
                %156 = vst [vmem:[%s124 + $0x78] sm:$0xff] %v155
                %v157 = vld [vmem:[%s123 + $0x200] sm:$0xff]
                %158 = vst [vmem:[%s124 + $0x80] sm:$0xff] %v157
                %v159 = vld [vmem:[%s123 + $0x208] sm:$0xff]
                %160 = vst [vmem:[%s124 + $0x88] sm:$0xff] %v159
                %v161 = vld [vmem:[%s123 + $0x240] sm:$0xff]
                %162 = vst [vmem:[%s124 + $0x90] sm:$0xff] %v161
                %v163 = vld [vmem:[%s123 + $0x248] sm:$0xff]
                %164 = vst [vmem:[%s124 + $0x98] sm:$0xff] %v163
                %v165 = vld [vmem:[%s123 + $0x280] sm:$0xff]
                %166 = vst [vmem:[%s124 + $0xa0] sm:$0xff] %v165
                %v167 = vld [vmem:[%s123 + $0x288] sm:$0xff]
                %168 = vst [vmem:[%s124 + $0xa8] sm:$0xff] %v167
                %v169 = vld [vmem:[%s123 + $0x2c0] sm:$0xff]
                %170 = vst [vmem:[%s124 + $0xb0] sm:$0xff] %v169
                %v171 = vld [vmem:[%s123 + $0x2c8] sm:$0xff]
                %172 = vst [vmem:[%s124 + $0xb8] sm:$0xff] %v171
                %v173 = vld [vmem:[%s123 + $0x300] sm:$0xff]
                %174 = vst [vmem:[%s124 + $0xc0] sm:$0xff] %v173
                %v175 = vld [vmem:[%s123 + $0x308] sm:$0xff]
                %176 = vst [vmem:[%s124 + $0xc8] sm:$0xff] %v175
                %v177 = vld [vmem:[%s123 + $0x340] sm:$0xff]
                %178 = vst [vmem:[%s124 + $0xd0] sm:$0xff] %v177
                %v179 = vld [vmem:[%s123 + $0x348] sm:$0xff]
                %180 = vst [vmem:[%s124 + $0xd8] sm:$0xff] %v179
                %v181 = vld [vmem:[%s123 + $0x380] sm:$0xff]
                %182 = vst [vmem:[%s124 + $0xe0] sm:$0xff] %v181
                %v183 = vld [vmem:[%s123 + $0x388] sm:$0xff]
                %184 = vst [vmem:[%s124 + $0xe8] sm:$0xff] %v183
                %v185 = vld [vmem:[%s123 + $0x3c0] sm:$0xff]
                %186 = vst [vmem:[%s124 + $0xf0] sm:$0xff] %v185
                %v187 = vld [vmem:[%s123 + $0x3c8] sm:$0xff]
                %188 = vst [vmem:[%s124 + $0xf8] sm:$0xff] %v187
              $region37: #{wgan_g_forward.7} parent=31 // loop_footer
                %s122 = sadd.s32 1, %s118
              $region38: #{wgan_g_forward.7} parent=31 // loop_footer_branch
                %117 = sbr.rel target = $region34
              $region39: #{wgan_g_forward.7} parent=31 // loop_exit
                _
            $region32: #{wgan_g_forward.7} parent=27 // pred_fallthru
              _
            // Predicated region
            $region40: #{wgan_g_forward.7} parent=27 // pred_check
              _
            $region41: #{wgan_g_forward.7} parent=27 // pred_check_branch
              %190 = sbr.rel target = $region43
            $region42: #{wgan_g_forward.7} parent=27 // pred_region
              _
            $region43: #{wgan_g_forward.7} parent=27 // pred_fallthru
              _
          $region28: #{wgan_g_forward.7} parent=23 // pred_fallthru
            _
          %191 = vnop
        $region24: #{wgan_g_forward.7} parent=19 // pred_fallthru
          _
      $region20: #{wgan_g_forward.7} parent=5 // pred_fallthru
        _
      %p192 = scmp.le.s32.totalorder 1, %s8
      %p193 = scmp.lt.s32.totalorder %s8, 5
      %p194 = pnand %p192, %p193
      %p195 = pneg %p194
      // Predicated region
      $region44: #{wgan_g_forward.7} parent=5 // pred_check
        _
      $region45: #{wgan_g_forward.7} parent=5 // pred_check_branch
        %197 = sbr.rel (%p194) target = $region47
      $region46: #{wgan_g_forward.7} parent=5 // pred_region
        %s198 = ssub.s32 %s8, 1
        %s199 = sand.u32 %s42, 1
        %s200 = sand.u32 %s42, 1
        %s201 = smul.addr %s200, 256
        %s202 = scalar_lea.vmem [#allocation2], %s201
        // Predicated region
        $region48: #{wgan_g_forward.7} parent=46 // pred_check
          %p203 = pneg %p55
        $region49: #{wgan_g_forward.7} parent=46 // pred_check_branch
          %205 = sbr.rel (%p203) target = $region51
        $region50: #{wgan_g_forward.7} parent=46 // pred_region
          _
        $region51: #{wgan_g_forward.7} parent=46 // pred_fallthru
          _
        %p206 = pneg %p29
        %p207 = pneg %p26
        %s208 = sand.u32 %s42, 1
        %s209 = sand.u32 %s42, 1
        %s210 = smul.addr %s209, 256
        %s211 = scalar_lea.vmem [#allocation2], %s210
        %p212 = pneg %p55
        %p213 = pneg %p52
        %p214 = pneg %p81
        %p215 = pneg %p78
        %s216 = smul.u32 4, %s13
        %p217 = scmp.lt.s32.totalorder %s216, 15
        %s218 = scalar_select %p217, %s216, 15
        %s219 = scalar_lea.vmem %s2, %s218
        %s220 = smul.u32 4, %s13
        %s221 = smul.u32 4, %s13
        %p222 = scmp.lt.s32.totalorder %s221, 15
        %s223 = scalar_select %p222, %s221, 15
        %s224 = scalar_lea.vmem %s2, %s223
        %s225 = smul.u32 4, %s13
        %v226 = vld [vmem:[%s0] sm:$0x1]
        %v227 = vld [vmem:[%s202] sm:$0xff]
        %v228 = vld [vmem:[%s202 + $0x8] sm:$0xff]
        %v229 = vld [vmem:[%s202 + $0x10] sm:$0xff]
        %v230 = vld [vmem:[%s202 + $0x18] sm:$0xff]
        %v231 = vld [vmem:[%s202 + $0x20] sm:$0xff]
        %v232 = vld [vmem:[%s202 + $0x28] sm:$0xff]
        %v233 = vld [vmem:[%s202 + $0x30] sm:$0xff]
        %v234 = vld [vmem:[%s202 + $0x38] sm:$0xff]
        %v235 = vld [vmem:[%s202 + $0x40] sm:$0xff]
        %v236 = vld [vmem:[%s202 + $0x48] sm:$0xff]
        %v237 = vld [vmem:[%s202 + $0x50] sm:$0xff]
        %v238 = vld [vmem:[%s202 + $0x58] sm:$0xff]
        %v239 = vld [vmem:[%s202 + $0x60] sm:$0xff]
        %v240 = vld [vmem:[%s202 + $0x68] sm:$0xff]
        %v241 = vld [vmem:[%s202 + $0x70] sm:$0xff]
        %v242 = vld [vmem:[%s202 + $0x78] sm:$0xff]
        %v243 = vld [vmem:[%s202 + $0x80] sm:$0xff]
        %v244 = vld [vmem:[%s202 + $0x88] sm:$0xff]
        %v245 = vld [vmem:[%s202 + $0x90] sm:$0xff]
        %v246 = vld [vmem:[%s202 + $0x98] sm:$0xff]
        %v247 = vld [vmem:[%s202 + $0xa0] sm:$0xff]
        %v248 = vld [vmem:[%s202 + $0xa8] sm:$0xff]
        %v249 = vld [vmem:[%s202 + $0xb0] sm:$0xff]
        %v250 = vld [vmem:[%s202 + $0xb8] sm:$0xff]
        %v251 = vld [vmem:[%s202 + $0xc0] sm:$0xff]
        %v252 = vld [vmem:[%s202 + $0xc8] sm:$0xff]
        %v253 = vld [vmem:[%s202 + $0xd0] sm:$0xff]
        %v254 = vld [vmem:[%s202 + $0xd8] sm:$0xff]
        %v255 = vld [vmem:[%s202 + $0xe0] sm:$0xff]
        %v256 = vld [vmem:[%s202 + $0xe8] sm:$0xff]
        %v257 = vld [vmem:[%s202 + $0xf0] sm:$0xff]
        %v258 = vld [vmem:[%s202 + $0xf8] sm:$0xff]
        %v291 = vunpack.c.l.b16 %v227
        %v292 = vunpack.c.h.b16 %v227
        %v293 = vunpack.c.l.b16 %v228
        %v294 = vunpack.c.h.b16 %v228
        %v295 = vunpack.c.l.b16 %v229
        %v296 = vunpack.c.h.b16 %v229
        %v297 = vunpack.c.l.b16 %v230
        %v298 = vunpack.c.h.b16 %v230
        %v299 = vunpack.c.l.b16 %v231
        %v300 = vunpack.c.h.b16 %v231
        %v301 = vunpack.c.l.b16 %v232
        %v302 = vunpack.c.h.b16 %v232
        %v303 = vunpack.c.l.b16 %v233
        %v304 = vunpack.c.h.b16 %v233
        %v305 = vunpack.c.l.b16 %v234
        %v306 = vunpack.c.h.b16 %v234
        %v307 = vunpack.c.l.b16 %v235
        %v308 = vunpack.c.h.b16 %v235
        %v309 = vunpack.c.l.b16 %v236
        %v310 = vunpack.c.h.b16 %v236
        %v311 = vunpack.c.l.b16 %v237
        %v312 = vunpack.c.h.b16 %v237
        %v313 = vunpack.c.l.b16 %v238
        %v314 = vunpack.c.h.b16 %v238
        %v315 = vunpack.c.l.b16 %v239
        %v316 = vunpack.c.h.b16 %v239
        %v317 = vunpack.c.l.b16 %v240
        %v318 = vunpack.c.h.b16 %v240
        %v319 = vunpack.c.l.b16 %v241
        %v320 = vunpack.c.h.b16 %v241
        %v321 = vunpack.c.l.b16 %v242
        %v322 = vunpack.c.h.b16 %v242
        %v323 = vunpack.c.l.b16 %v243
        %v324 = vunpack.c.h.b16 %v243
        %v325 = vunpack.c.l.b16 %v244
        %v326 = vunpack.c.h.b16 %v244
        %v327 = vunpack.c.l.b16 %v245
        %v328 = vunpack.c.h.b16 %v245
        %v329 = vunpack.c.l.b16 %v246
        %v330 = vunpack.c.h.b16 %v246
        %v331 = vunpack.c.l.b16 %v247
        %v332 = vunpack.c.h.b16 %v247
        %v333 = vunpack.c.l.b16 %v248
        %v334 = vunpack.c.h.b16 %v248
        %v335 = vunpack.c.l.b16 %v249
        %v336 = vunpack.c.h.b16 %v249
        %v337 = vunpack.c.l.b16 %v250
        %v338 = vunpack.c.h.b16 %v250
        %v339 = vunpack.c.l.b16 %v251
        %v340 = vunpack.c.h.b16 %v251
        %v341 = vunpack.c.l.b16 %v252
        %v342 = vunpack.c.h.b16 %v252
        %v343 = vunpack.c.l.b16 %v253
        %v344 = vunpack.c.h.b16 %v253
        %v345 = vunpack.c.l.b16 %v254
        %v346 = vunpack.c.h.b16 %v254
        %v347 = vunpack.c.l.b16 %v255
        %v348 = vunpack.c.h.b16 %v255
        %v349 = vunpack.c.l.b16 %v256
        %v350 = vunpack.c.h.b16 %v256
        %v351 = vunpack.c.l.b16 %v257
        %v352 = vunpack.c.h.b16 %v257
        %v353 = vunpack.c.l.b16 %v258
        %v354 = vunpack.c.h.b16 %v258
        %v355 = vpack.c.b16 %v295, %v291
        %v356 = vpack.c.b16 %v296, %v292
        %v357 = vpack.c.b16 %v297, %v293
        %v358 = vpack.c.b16 %v298, %v294
        %v359 = vpack.c.b16 %v303, %v299
        %v360 = vpack.c.b16 %v304, %v300
        %v361 = vpack.c.b16 %v305, %v301
        %v362 = vpack.c.b16 %v306, %v302
        %v363 = vpack.c.b16 %v311, %v307
        %v364 = vpack.c.b16 %v312, %v308
        %v365 = vpack.c.b16 %v313, %v309
        %v366 = vpack.c.b16 %v314, %v310
        %v367 = vpack.c.b16 %v319, %v315
        %v368 = vpack.c.b16 %v320, %v316
        %v369 = vpack.c.b16 %v321, %v317
        %v370 = vpack.c.b16 %v322, %v318
        %v371 = vpack.c.b16 %v327, %v323
        %v372 = vpack.c.b16 %v328, %v324
        %v373 = vpack.c.b16 %v329, %v325
        %v374 = vpack.c.b16 %v330, %v326
        %v375 = vpack.c.b16 %v335, %v331
        %v376 = vpack.c.b16 %v336, %v332
        %v377 = vpack.c.b16 %v337, %v333
        %v378 = vpack.c.b16 %v338, %v334
        %v379 = vpack.c.b16 %v343, %v339
        %v380 = vpack.c.b16 %v344, %v340
        %v381 = vpack.c.b16 %v345, %v341
        %v382 = vpack.c.b16 %v346, %v342
        %v383 = vpack.c.b16 %v351, %v347
        %v384 = vpack.c.b16 %v352, %v348
        %v385 = vpack.c.b16 %v353, %v349
        %v386 = vpack.c.b16 %v354, %v350
        %419 = vmatpush.bf16.msra.mxu0 %v383
        %420 = vmatpush.bf16.msra.mxu0 %v379
        %421 = vmatpush.bf16.msra.mxu0 %v375
        %422 = vmatpush.bf16.msra.mxu0 %v371
        %423 = vmatpush.bf16.msra.mxu0 %v367
        %424 = vmatpush.bf16.msra.mxu0 %v363
        %425 = vmatpush.bf16.msra.mxu0 %v359
        %426 = vmatpush.bf16.msra.mxu0 %v355
        %427 = vmatmul.bf16.gmra.mxu0 %v226
        %v428 = vpop.f32.mrf.mxu0
        %v429 = vadd.f32 0.0, %v428
        %v430 = vpop.f32.mrf.mxu0
        %431 = vdwg.mxu0
        %432 = vmatpush.bf16.msra.mxu0 %v384
        %433 = vmatpush.bf16.msra.mxu0 %v380
        %434 = vmatpush.bf16.msra.mxu0 %v376
        %435 = vmatpush.bf16.msra.mxu0 %v372
        %436 = vmatpush.bf16.msra.mxu0 %v368
        %437 = vmatpush.bf16.msra.mxu0 %v364
        %438 = vmatpush.bf16.msra.mxu0 %v360
        %439 = vmatpush.bf16.msra.mxu0 %v356
        %440 = vmatmul.bf16.gmra.mxu0 %v226
        %v441 = vpop.f32.mrf.mxu0
        %v442 = vadd.f32 0.0, %v441
        %v443 = vpop.f32.mrf.mxu0
        %444 = vdwg.mxu0
        %445 = vmatpush.bf16.msra.mxu0 %v385
        %446 = vmatpush.bf16.msra.mxu0 %v381
        %447 = vmatpush.bf16.msra.mxu0 %v377
        %448 = vmatpush.bf16.msra.mxu0 %v373
        %449 = vmatpush.bf16.msra.mxu0 %v369
        %450 = vmatpush.bf16.msra.mxu0 %v365
        %451 = vmatpush.bf16.msra.mxu0 %v361
        %452 = vmatpush.bf16.msra.mxu0 %v357
        %453 = vmatmul.bf16.gmra.mxu0 %v226
        %v454 = vpop.f32.mrf.mxu0
        %v455 = vadd.f32 0.0, %v454
        %v456 = vpop.f32.mrf.mxu0
        %457 = vdwg.mxu0
        %458 = vmatpush.bf16.msra.mxu0 %v386
        %459 = vmatpush.bf16.msra.mxu0 %v382
        %460 = vmatpush.bf16.msra.mxu0 %v378
        %461 = vmatpush.bf16.msra.mxu0 %v374
        %462 = vmatpush.bf16.msra.mxu0 %v370
        %463 = vmatpush.bf16.msra.mxu0 %v366
        %464 = vmatpush.bf16.msra.mxu0 %v362
        %465 = vmatpush.bf16.msra.mxu0 %v358
        %466 = vmatmul.bf16.gmra.mxu0 %v226
        %v467 = vpop.f32.mrf.mxu0
        %v468 = vadd.f32 0.0, %v467
        %v469 = vpop.f32.mrf.mxu0
        %470 = vdwg.mxu0
        %v471 = vsub.f32 0.0, %v429
        %v472 = vsub.f32 0.0, %v442
        %v473 = vsub.f32 0.0, %v455
        %v474 = vsub.f32 0.0, %v468
        %v475 = vmul.f32 %v471, 1.442695
        %v476 = vpow.pop %v475
        %v477 = vmul.f32 %v472, 1.442695
        %v478 = vpow.pop %v477
        %v479 = vmul.f32 %v473, 1.442695
        %v480 = vpow.pop %v479
        %v481 = vmul.f32 %v474, 1.442695
        %v482 = vpow.pop %v481
        %v483 = vadd.f32 %v476, 1.0
        %v484 = vadd.f32 %v478, 1.0
        %v485 = vadd.f32 %v480, 1.0
        %v486 = vadd.f32 %v482, 1.0
        %v487 = vrcp.pop %v483
        %v488 = vmul.f32 %v483, %v487
        %v489 = vsub.f32 1.0, %v488
        %v490 = vmul.f32 %v487, %v489
        %v491 = vadd.f32 %v487, %v490
        %vm492 = vweird.f32 %v483
        %vm493 = vweird.f32 %v487
        %vm494 = vmor %vm492, %vm493
        %v495 = vsel %vm494, %v487, %v491
        %v496 = vand.u32 2147483647, %v483
        %vm497 = vcmp.eq.f32.partialorder %v496, 8.507059e+37
        %v498 = vand.u32 %v483, 2147483648
        %v499 = vor.u32 1.1754944e-38, %v498
        %v500 = vsel %vm497, %v499, %v495
        %v501 = vmul.f32 1.0, %v500
        %v502 = vrcp.pop %v484
        %v503 = vmul.f32 %v484, %v502
        %v504 = vsub.f32 1.0, %v503
        %v505 = vmul.f32 %v502, %v504
        %v506 = vadd.f32 %v502, %v505
        %vm507 = vweird.f32 %v484
        %vm508 = vweird.f32 %v502
        %vm509 = vmor %vm507, %vm508
        %v510 = vsel %vm509, %v502, %v506
        %v511 = vand.u32 2147483647, %v484
        %vm512 = vcmp.eq.f32.partialorder %v511, 8.507059e+37
        %v513 = vand.u32 %v484, 2147483648
        %v514 = vor.u32 1.1754944e-38, %v513
        %v515 = vsel %vm512, %v514, %v510
        %v516 = vmul.f32 1.0, %v515
        %v517 = vrcp.pop %v485
        %v518 = vmul.f32 %v485, %v517
        %v519 = vsub.f32 1.0, %v518
        %v520 = vmul.f32 %v517, %v519
        %v521 = vadd.f32 %v517, %v520
        %vm522 = vweird.f32 %v485
        %vm523 = vweird.f32 %v517
        %vm524 = vmor %vm522, %vm523
        %v525 = vsel %vm524, %v517, %v521
        %v526 = vand.u32 2147483647, %v485
        %vm527 = vcmp.eq.f32.partialorder %v526, 8.507059e+37
        %v528 = vand.u32 %v485, 2147483648
        %v529 = vor.u32 1.1754944e-38, %v528
        %v530 = vsel %vm527, %v529, %v525
        %v531 = vmul.f32 1.0, %v530
        %v532 = vrcp.pop %v486
        %v533 = vmul.f32 %v486, %v532
        %v534 = vsub.f32 1.0, %v533
        %v535 = vmul.f32 %v532, %v534
        %v536 = vadd.f32 %v532, %v535
        %vm537 = vweird.f32 %v486
        %vm538 = vweird.f32 %v532
        %vm539 = vmor %vm537, %vm538
        %v540 = vsel %vm539, %v532, %v536
        %v541 = vand.u32 2147483647, %v486
        %vm542 = vcmp.eq.f32.partialorder %v541, 8.507059e+37
        %v543 = vand.u32 %v486, 2147483648
        %v544 = vor.u32 1.1754944e-38, %v543
        %v545 = vsel %vm542, %v544, %v540
        %v546 = vmul.f32 1.0, %v545
        %v551 = vrot.slane %v516, 7
        %v552 = vrot.slane %v531, 6
        %v553 = vrot.slane %v546, 5
        %vm554 = vcmask 1040384
        %v555 = vsel %vm554, %v501, %v551
        %vm556 = vcmask 1042434
        %v557 = vsel %vm556, %v552, %v553
        %vm558 = vcmask 1041408
        %v559 = vsel %vm558, %v555, %v557
        %v561 = vlaneseq
        %vm562 = vcmp.ge.s32.totalorder %v561, 0
        %vm563 = vcmp.lt.s32.totalorder %v561, 512
        %vm564 = vmand %vm562, %vm563
        %565 = vst.msk [vmem:[%s224] sm:$0xf] %vm564, %v559
        %s566 = smul.u32 4, %s13
        %p567 = scmp.lt.s32.totalorder %s566, 15
        %s568 = scalar_select %p567, %s566, 15
        %s569 = scalar_lea.vmem %s2, %s568
        // Predicated region
        $region52: #{wgan_g_forward.7} parent=46 // pred_check
          %p570 = pneg %p78
        $region53: #{wgan_g_forward.7} parent=46 // pred_check_branch
          %572 = sbr.rel (%p570) target = $region55
        $region54: #{wgan_g_forward.7} parent=46 // pred_region
          %s573 = smul.u32 4, %s13
        $region55: #{wgan_g_forward.7} parent=46 // pred_fallthru
          _
      $region47: #{wgan_g_forward.7} parent=5 // pred_fallthru
        _
      %p574 = scmp.le.s32.totalorder 2, %s8
      // Predicated region
      $region56: #{wgan_g_forward.7} parent=5 // pred_check
        %p575 = pneg %p574
      $region57: #{wgan_g_forward.7} parent=5 // pred_check_branch
        %577 = sbr.rel (%p575) target = $region59
      $region58: #{wgan_g_forward.7} parent=5 // pred_region
        %s578 = ssub.s32 %s8, 2
        // Predicated region
        $region60: #{wgan_g_forward.7} parent=58 // pred_check
          %p579 = pneg %p84
        $region61: #{wgan_g_forward.7} parent=58 // pred_check_branch
          %581 = sbr.rel (%p579) target = $region63
        $region62: #{wgan_g_forward.7} parent=58 // pred_region
          %s582 = smul.u32 4, %s14
          %p583 = scmp.lt.s32.totalorder %s582, 15
          %s584 = scalar_select %p583, %s582, 15
          %s585 = scalar_lea.vmem %s2, %s584
        $region63: #{wgan_g_forward.7} parent=58 // pred_fallthru
          _
      $region59: #{wgan_g_forward.7} parent=5 // pred_fallthru
        _
    $region6: #{wgan_g_forward.7} parent=1 // loop_footer
      %s12 = sadd.s32 1, %s8
    $region7: #{wgan_g_forward.7} parent=1 // loop_footer_branch
      %7 = sbr.rel target = $region3
    $region8: #{wgan_g_forward.7} parent=1 // loop_exit
      _

</llo_original>
